<compile_context>
chip_gen: v5e
topology: v5e:2x2
jax: 0.10.0
libtpu: 0.0.40
codegen_flags: <defaults>
</compile_context>

<pallas_src>
import jax
import jax.numpy as jnp
from jax.experimental import pallas as pl
from jax.experimental.pallas import tpu as pltpu

LANE = 128
_NEG = -1e30  # masked fill for max pool (an empty graph would return this sentinel)


def _round_up(x, m):
    return ((x + m - 1) // m) * m


def _pick_tile(n):
    # Bigger tiles cut per-step overhead (~0.35 us/step) and sit near the HBM
    # roofline plateau; 128 keeps padding overhead small for toy graphs.
    if n >= 2048:
        return 1024
    if n >= 512:
        return 512
    return 128


def _agg_vmem_limit(n_pad, h_pad, tm, tk):
    zl = 2 * n_pad * h_pad * 2      # resident zl, (default) double-buffered, bf16
    a = 2 * tm * tk * 1             # int8 adjacency tiles
    rs = 2 * tm * 4                 # 1/deg row scale
    zr = 2 * tm * h_pad * 2         # root term tiles
    out = 2 * tm * h_pad * 2        # output tiles
    acc = tm * h_pad * 4            # f32 accumulator scratch
    need = zl + a + rs + zr + out + acc + (4 << 20)   # + headroom
    return int(max(need, 32 << 20))


# ---------------------------------------------------------------------------
# Pallas kernels
# ---------------------------------------------------------------------------

def _proj_kernel(x_ref, w_ref, b_ref, o_ref):
    """z = x @ [Wl'|Wr']^T + [0|b']  (BN scale folded into W, BN shift into b)."""
    z = jnp.dot(x_ref[...], w_ref[...], preferred_element_type=jnp.float32)
    o_ref[...] = (z + b_ref[...]).astype(o_ref.dtype)


def _agg_kernel(a_ref, zl_ref, zr_ref, rs_ref, o_ref, acc_ref):
    """h = relu(rowscale * (A01 @ zl) + zr), accumulated over K tiles of A."""
    k = pl.program_id(1)

    @pl.when(k == 0)
    def _():
        acc_ref[...] = jnp.zeros_like(acc_ref)

    tk = a_ref.shape[1]
    start = pl.multiple_of(k * tk, tk)
    # int8 0/1 adjacency (exact) -> bf16 on-chip for the MXU; zl is VMEM-resident
    # for the whole call and sliced per K step.
    a = a_ref[...].astype(jnp.float32).astype(jnp.bfloat16)
    zl = zl_ref[pl.ds(start, tk), :]
    acc_ref[...] += jnp.dot(a, zl, preferred_element_type=jnp.float32)

    @pl.when(k == pl.num_programs(1) - 1)
    def _():
        # Mean aggregation: exact f32 per-row 1/deg scale folded into the epilogue.
        h = acc_ref[...] * rs_ref[...] + zr_ref[...].astype(jnp.float32)
        o_ref[...] = jnp.maximum(h, 0.0).astype(o_ref.dtype)


def _pool_kernel(ids_ref, x_ref, o_ref):
    """global_max_pool: single pass over node tiles, (G, H) accumulator resident."""
    @pl.when(pl.program_id(0) == 0)
    def _():
        o_ref[...] = jnp.full_like(o_ref, _NEG)

    vals = x_ref[...].astype(jnp.float32)                       # [TM, H]
    ids = ids_ref[...]                                          # [TM, 1]
    # Static per-graph broadcast-compare max (fine for small G; padded nodes have
    # id = -1 and never match).
    for g in range(o_ref.shape[0]):
        gmax = jnp.max(jnp.where(ids == g, vals, _NEG), axis=0, keepdims=True)
        o_ref[pl.ds(g, 1), :] = jnp.maximum(o_ref[pl.ds(g, 1), :], gmax)


# ---------------------------------------------------------------------------
# pallas_call wrappers
# ---------------------------------------------------------------------------

def sage_project(x_pad, w_cat, b_cat, tile):
    n_pad, f_pad = x_pad.shape
    two_h = w_cat.shape[1]
    return pl.pallas_call(
        _proj_kernel,
        out_shape=jax.ShapeDtypeStruct((n_pad, two_h), jnp.bfloat16),
        grid=(n_pad // tile,),
        in_specs=[pl.BlockSpec((tile, f_pad), lambda i: (i, 0)),
                  pl.BlockSpec((f_pad, two_h), lambda i: (0, 0)),
                  pl.BlockSpec((1, two_h), lambda i: (0, 0))],
        out_specs=pl.BlockSpec((tile, two_h), lambda i: (i, 0)),
        compiler_params=pltpu.CompilerParams(
            dimension_semantics=("parallel",)),
    )(x_pad, w_cat, b_cat)


def sage_aggregate(a_pad, z, rowscale, h_pad, tm, tk):
    n_pad = a_pad.shape[0]
    # z is passed twice: once as the resident full-column block zl = z[:, :h_pad],
    # once row-blocked as zr = z[:, h_pad:] (no wrapper-side split copies needed).
    return pl.pallas_call(
        _agg_kernel,
        out_shape=jax.ShapeDtypeStruct((n_pad, h_pad), jnp.bfloat16),
        grid=(n_pad // tm, n_pad // tk),
        in_specs=[
            pl.BlockSpec((tm, tk), lambda i, k: (i, k)),         # A (int8, 0/1 exact)
            pl.BlockSpec((n_pad, h_pad), lambda i, k: (0, 0)),   # zl, VMEM-resident
            pl.BlockSpec((tm, h_pad), lambda i, k: (i, 1)),      # zr
            pl.BlockSpec((tm, 1), lambda i, k: (i, 0)),          # 1/deg row scale
        ],
        out_specs=pl.BlockSpec((tm, h_pad), lambda i, k: (i, 0)),
        scratch_shapes=[pltpu.VMEM((tm, h_pad), jnp.float32)],
        compiler_params=pltpu.CompilerParams(
            dimension_semantics=("parallel", "arbitrary"),
            vmem_limit_bytes=_agg_vmem_limit(n_pad, h_pad, tm, tk)),
    )(a_pad, z, z, rowscale)


def global_max_pool(ids_pad, h, num_graphs, tile):
    n_pad, h_pad = h.shape
    return pl.pallas_call(
        _pool_kernel,
        out_shape=jax.ShapeDtypeStruct((num_graphs, h_pad), jnp.float32),
        grid=(n_pad // tile,),
        in_specs=[pl.BlockSpec((tile, 1), lambda j: (j, 0)),
                  pl.BlockSpec((tile, h_pad), lambda j: (j, 0))],
        out_specs=pl.BlockSpec((num_graphs, h_pad), lambda j: (0, 0)),
        compiler_params=pltpu.CompilerParams(
            dimension_semantics=("arbitrary",)),
    )(ids_pad, h)


# ---------------------------------------------------------------------------
# Model wrapper (glue in plain JAX)
# ---------------------------------------------------------------------------

def _fold_bn(gamma, beta, running_mean, running_var, eps=1e-5):
    scale = gamma / jnp.sqrt(running_var + eps)
    shift = beta - running_mean * scale
    return scale, shift


def _layer_weights(wl, bl, wr, bn, f_pad, h_pad):
    """Fold BN into the SAGEConv weights and build the fused, lane-padded [Wl'|Wr']."""
    scale, shift = _fold_bn(*bn)
    wl_f = wl * scale[:, None]            # lin_l (aggregated neighbors, has bias)
    wr_f = wr * scale[:, None]            # lin_r (root, no bias)
    b_f = bl * scale + shift
    hch, fin = wl.shape
    w_cat = jnp.zeros((f_pad, 2 * h_pad), jnp.float32)
    w_cat = w_cat.at[:fin, :hch].set(wl_f.T)
    w_cat = w_cat.at[:fin, h_pad:h_pad + hch].set(wr_f.T)
    b_cat = jnp.zeros((1, 2 * h_pad), jnp.float32)
    b_cat = b_cat.at[0, h_pad:h_pad + hch].set(b_f)
    return w_cat.astype(jnp.bfloat16), b_cat


def init_params(key, num_node_features, hidden_channels, num_layers):
    params = {"convs": [], "gnn_bns": []}
    fin = num_node_features
    for _ in range(num_layers):
        key, k1, k2, k3, k4, k5 = jax.random.split(key, 6)
        wl = jax.random.normal(k1, (hidden_channels, fin), jnp.float32) * 0.1
        bl = jax.random.normal(k2, (hidden_channels,), jnp.float32) * 0.1
        wr = jax.random.normal(k3, (hidden_channels, fin), jnp.float32) * 0.1
        params["convs"].append((wl, bl, wr))
        gamma = 1.0 + 0.1 * jax.random.normal(k4, (hidden_channels,), jnp.float32)
        beta = 0.1 * jax.random.normal(k5, (hidden_channels,), jnp.float32)
        params["gnn_bns"].append((gamma, beta,
                                  jnp.zeros((hidden_channels,), jnp.float32),
                                  jnp.ones((hidden_channels,), jnp.float32)))
        fin = hidden_channels

    hid2 = hidden_channels // 2
    key, k1, k2, k3, k4, k5, k6 = jax.random.split(key, 7)
    params["mlp_hidden"] = (
        jax.random.normal(k1, (hid2, hidden_channels), jnp.float32) * 0.1,
        jax.random.normal(k2, (hid2,), jnp.float32) * 0.1,
    )
    params["bn"] = (1.0 + 0.1 * jax.random.normal(k3, (hid2,), jnp.float32),
                    0.1 * jax.random.normal(k4, (hid2,), jnp.float32),
                    jnp.zeros((hid2,), jnp.float32),
                    jnp.ones((hid2,), jnp.float32))
    params["mlp_output"] = (
        jax.random.normal(k5, (1, hid2), jnp.float32) * 0.1,
        jax.random.normal(k6, (1,), jnp.float32) * 0.1,
    )
    return params


def graphsage_forward(params, x, edge_index, batch, num_graphs):
    n, f_in = x.shape
    hch = params["convs"][0][0].shape[0]
    tile = _pick_tile(n)
    n_pad = _round_up(n, tile)
    f_pad = _round_up(f_in, LANE)
    h_pad = _round_up(hch, LANE)

    # Exact 0/1 (edge multiplicity) adjacency in int8 + separate f32 1/deg row scale.
    src, dst = edge_index[0], edge_index[1]
    counts = jnp.zeros((n, n), jnp.float32).at[dst, src].add(1.0)
    deg = jnp.sum(counts, axis=1)
    deg_inv = 1.0 / jnp.maximum(deg, 1.0)          # isolated nodes aggregate to 0
    a_pad = jnp.zeros((n_pad, n_pad), jnp.int8).at[:n, :n].set(
        counts.astype(jnp.int8))
    rowscale = jnp.zeros((n_pad, 1), jnp.float32).at[:n, 0].set(deg_inv)

    h = jnp.zeros((n_pad, f_pad), jnp.bfloat16).at[:n, :f_in].set(
        x.astype(jnp.bfloat16))

    f_cur_pad = f_pad
    for (wl, bl, wr), bn in zip(params["convs"], params["gnn_bns"]):
        w_cat, b_cat = _layer_weights(wl, bl, wr, bn, f_cur_pad, h_pad)
        z = sage_project(h, w_cat, b_cat, tile)              # [n_pad, 2*h_pad] bf16
        h = sage_aggregate(a_pad, z, rowscale, h_pad, tile, tile)  # ReLU'd, bf16
        f_cur_pad = h_pad
    # NOTE: padded node rows of h are relu(bias) != 0, but A's padded columns are
    # exactly zero and pooling masks padded ids, so they never contaminate results.

    # global max pool; padded nodes carry graph id -1 and never match any graph.
    # (An empty graph would pool to the -1e30 sentinel; none exist in this setup.)
    ids_pad = jnp.full((n_pad, 1), -1, jnp.int32).at[:n, 0].set(
        batch.astype(jnp.int32))
    pooled = global_max_pool(ids_pad, h, num_graphs, tile)[:, :hch]  # [G, H] f32

    # Tiny MLP head ([G,H] @ [H,H/2] -> [G,1]) is far below one MXU tile: keep it in
    # plain JAX instead of forcing a lane-sparse Pallas store.
    w1, b1 = params["mlp_hidden"]
    scale, shift = _fold_bn(*params["bn"])
    w1_f = w1 * scale[:, None]
    b1_f = b1 * scale + shift
    h1 = jnp.maximum(pooled @ w1_f.T + b1_f, 0.0)
    w2, b2 = params["mlp_output"]
    return h1 @ w2.T + b2


# ---------------------------------------------------------------------------
# Main
# ---------------------------------------------------------------------------

if __name__ == "__main__":
    key = jax.random.PRNGKey(0)

    num_node_features = 16
    hidden_channels = 32
    num_layers = 3
    num_graphs = 2
    nodes_per_graph = 6
    n = num_graphs * nodes_per_graph  # 12 nodes total

    key, kx, kp = jax.random.split(key, 3)
    x = jax.random.normal(kx, (n, num_node_features), jnp.float32)

    # batch assignment: first 6 nodes -> graph 0, last 6 -> graph 1
    batch = jnp.repeat(jnp.arange(num_graphs), nodes_per_graph)

    # bidirectional ring edges inside each graph -> 24 edges total
    srcs, dsts = [], []
    for g in range(num_graphs):
        base = g * nodes_per_graph
        for i in range(nodes_per_graph):
            a = base + i
            b = base + (i + 1) % nodes_per_graph
            srcs += [a, b]
            dsts += [b, a]
    edge_index = jnp.array([srcs, dsts], dtype=jnp.int32)  # [2, 24]

    params = init_params(kp, num_node_features, hidden_channels, num_layers)

    fwd = jax.jit(graphsage_forward, static_argnums=(4,))
    out = fwd(params, x, edge_index, batch, num_graphs)
    out = jax.block_until_ready(out)
    assert out.shape == (num_graphs, 1)
    assert bool(jnp.all(jnp.isfinite(out)))
    print("KERNEL_OK")
</pallas_src>

<mosaic_0001>
module attributes {stable_mosaic.version = 11 : i64} {
  func.func @_proj_kernel(%arg0: i32, %arg1: memref<128x128xbf16, #tpu.memory_space<vmem>>, %arg2: memref<128x256xbf16, #tpu.memory_space<vmem>>, %arg3: memref<1x256xf32, #tpu.memory_space<vmem>>, %arg4: memref<128x256xbf16, #tpu.memory_space<vmem>>) attributes {dimension_semantics = [#tpu.dimension_semantics<parallel>], iteration_bounds = array<i64: 1>, scalar_prefetch = 0 : i64, scratch_operands = 0 : i64, tpu.core_type = #tpu.core_type<tc>, window_params = [{transform_indices = @transform_0, window_bounds = array<i64: 128, 128>}, {pipeline_mode = #tpu.pipeline_mode<synchronous>, transform_indices = @transform_1, window_bounds = array<i64: 128, 256>}, {pipeline_mode = #tpu.pipeline_mode<synchronous>, transform_indices = @transform_2, window_bounds = array<i64: 1, 256>}, {transform_indices = @transform_3, window_bounds = array<i64: 128, 256>}]} {
    %c0 = arith.constant 0 : index
    %c0_0 = arith.constant 0 : index
    %0 = vector.load %arg1[%c0, %c0_0] : memref<128x128xbf16, #tpu.memory_space<vmem>>, vector<128x128xbf16>
    %c0_1 = arith.constant 0 : index
    %c0_2 = arith.constant 0 : index
    %1 = vector.load %arg2[%c0_1, %c0_2] : memref<128x256xbf16, #tpu.memory_space<vmem>>, vector<128x256xbf16>
    %cst = arith.constant dense<0.000000e+00> : vector<128x256xf32>
    %2 = tpu.matmul %0, %1, %cst {dimension_numbers = #tpu.dot_dimension_numbers<[1], [0], [0], [1], [0, 0, 1, 1], [], []>} : vector<128x128xbf16>, vector<128x256xbf16>, vector<128x256xf32> -> vector<128x256xf32>
    %c0_3 = arith.constant 0 : index
    %c0_4 = arith.constant 0 : index
    %3 = vector.load %arg3[%c0_3, %c0_4] : memref<1x256xf32, #tpu.memory_space<vmem>>, vector<1x256xf32>
    %4 = vector.broadcast %3 : vector<1x256xf32> to vector<128x256xf32>
    %5 = arith.addf %2, %4 : vector<128x256xf32>
    %6 = arith.truncf %5 : vector<128x256xf32> to vector<128x256xbf16>
    %c0_5 = arith.constant 0 : index
    %c0_6 = arith.constant 0 : index
    %7 = vector.load %arg4[%c0_5, %c0_6] : memref<128x256xbf16, #tpu.memory_space<vmem>>, vector<128x256xbf16>
    tpu.vector_store %arg4[%c0_5, %c0_6], %6 {strides = array<i32>} : memref<128x256xbf16, #tpu.memory_space<vmem>>, vector<128x256xbf16>,
    return
  }
  func.func @transform_0(%arg0: i32) -> (i32, i32) {
    %c0_i32 = arith.constant 0 : i32
    %c0_i32_0 = arith.constant 0 : i32
    return %arg0, %c0_i32 : i32, i32
  }
  func.func @transform_1(%arg0: i32) -> (i32, i32) {
    %c0_i32 = arith.constant 0 : i32
    %c0_i32_0 = arith.constant 0 : i32
    %c0_i32_1 = arith.constant 0 : i32
    return %c0_i32, %c0_i32_0 : i32, i32
  }
  func.func @transform_2(%arg0: i32) -> (i32, i32) {
    %c0_i32 = arith.constant 0 : i32
    %c0_i32_0 = arith.constant 0 : i32
    %c0_i32_1 = arith.constant 0 : i32
    return %c0_i32, %c0_i32_0 : i32, i32
  }
  func.func @transform_3(%arg0: i32) -> (i32, i32) {
    %c0_i32 = arith.constant 0 : i32
    %c0_i32_0 = arith.constant 0 : i32
    return %arg0, %c0_i32 : i32, i32
  }
}

module attributes {stable_mosaic.version = 11 : i64} {
  func.func @_agg_kernel(%arg0: i32, %arg1: i32, %arg2: memref<128x128xi8, #tpu.memory_space<vmem>>, %arg3: memref<128x128xbf16, #tpu.memory_space<vmem>>, %arg4: memref<128x128xbf16, #tpu.memory_space<vmem>>, %arg5: memref<128x1xf32, #tpu.memory_space<vmem>>, %arg6: memref<128x128xbf16, #tpu.memory_space<vmem>>, %arg7: memref<128x128xf32, #tpu.memory_space<vmem>>) attributes {dimension_semantics = [#tpu.dimension_semantics<parallel>, #tpu.dimension_semantics<arbitrary>], iteration_bounds = array<i64: 1, 1>, scalar_prefetch = 0 : i64, scratch_operands = 1 : i64, tpu.core_type = #tpu.core_type<tc>, window_params = [{transform_indices = @transform_0, window_bounds = array<i64: 128, 128>}, {transform_indices = @transform_1, window_bounds = array<i64: 128, 128>}, {transform_indices = @transform_2, window_bounds = array<i64: 128, 128>}, {transform_indices = @transform_3, window_bounds = array<i64: 128, 1>}, {transform_indices = @transform_4, window_bounds = array<i64: 128, 128>}]} {
    %c0_i32 = arith.constant 0 : i32
    %0 = arith.cmpi eq, %arg1, %c0_i32 : i32
    %1 = arith.extui %0 : i1 to i32
    %c0_i32_0 = arith.constant 0 : i32
    %2 = arith.cmpi ne, %1, %c0_i32_0 : i32
    scf.if %2 {
      %cst_9 = arith.constant 0.000000e+00 : f32
      %17 = vector.broadcast %cst_9 : f32 to vector<128x128xf32>
      %c0_10 = arith.constant 0 : index
      %c0_11 = arith.constant 0 : index
      %18 = vector.load %arg7[%c0_10, %c0_11] : memref<128x128xf32, #tpu.memory_space<vmem>>, vector<128x128xf32>
      tpu.vector_store %arg7[%c0_10, %c0_11], %17 {strides = array<i32>} : memref<128x128xf32, #tpu.memory_space<vmem>>, vector<128x128xf32>,
    } else {
    }
    %c128_i32 = arith.constant 128 : i32
    %3 = arith.muli %arg1, %c128_i32 : i32
    %4 = tpu.assume_multiple %3, 128 : i32
    %c0 = arith.constant 0 : index
    %c0_1 = arith.constant 0 : index
    %5 = vector.load %arg2[%c0, %c0_1] : memref<128x128xi8, #tpu.memory_space<vmem>>, vector<128x128xi8>
    %6 = arith.sitofp %5 : vector<128x128xi8> to vector<128x128xf32>
    %7 = arith.truncf %6 : vector<128x128xf32> to vector<128x128xbf16>
    %8 = arith.index_cast %4 : i32 to index
    %c0_2 = arith.constant 0 : index
    %9 = vector.load %arg3[%8, %c0_2] : memref<128x128xbf16, #tpu.memory_space<vmem>>, vector<128x128xbf16>
    %c0_3 = arith.constant 0 : index
    %c0_4 = arith.constant 0 : index
    %10 = vector.load %arg7[%c0_3, %c0_4] : memref<128x128xf32, #tpu.memory_space<vmem>>, vector<128x128xf32>
    %cst = arith.constant dense<0.000000e+00> : vector<128x128xf32>
    %11 = tpu.matmul %7, %9, %cst {dimension_numbers = #tpu.dot_dimension_numbers<[1], [0], [0], [1], [0, 0, 1, 1], [], []>} : vector<128x128xbf16>, vector<128x128xbf16>, vector<128x128xf32> -> vector<128x128xf32>
    %12 = arith.addf %10, %11 : vector<128x128xf32>
    %c0_5 = arith.constant 0 : index
    %c0_6 = arith.constant 0 : index
    %13 = vector.load %arg7[%c0_5, %c0_6] : memref<128x128xf32, #tpu.memory_space<vmem>>, vector<128x128xf32>
    tpu.vector_store %arg7[%c0_5, %c0_6], %12 {strides = array<i32>} : memref<128x128xf32, #tpu.memory_space<vmem>>, vector<128x128xf32>,
    %c0_i32_7 = arith.constant 0 : i32
    %14 = arith.cmpi eq, %arg1, %c0_i32_7 : i32
    %15 = arith.extui %14 : i1 to i32
    %c0_i32_8 = arith.constant 0 : i32
    %16 = arith.cmpi ne, %15, %c0_i32_8 : i32
    scf.if %16 {
      %c0_9 = arith.constant 0 : index
      %c0_10 = arith.constant 0 : index
      %17 = vector.load %arg7[%c0_9, %c0_10] : memref<128x128xf32, #tpu.memory_space<vmem>>, vector<128x128xf32>
      %c0_11 = arith.constant 0 : index
      %c0_12 = arith.constant 0 : index
      %18 = vector.load %arg5[%c0_11, %c0_12] : memref<128x1xf32, #tpu.memory_space<vmem>>, vector<128x1xf32>
      %19 = vector.broadcast %18 : vector<128x1xf32> to vector<128x128xf32>
      %20 = arith.mulf %17, %19 : vector<128x128xf32>
      %c0_13 = arith.constant 0 : index
      %c0_14 = arith.constant 0 : index
      %21 = vector.load %arg4[%c0_13, %c0_14] : memref<128x128xbf16, #tpu.memory_space<vmem>>, vector<128x128xbf16>
      %22 = arith.extf %21 : vector<128x128xbf16> to vector<128x128xf32>
      %23 = arith.addf %20, %22 : vector<128x128xf32>
      %cst_15 = arith.constant 0.000000e+00 : f32
      %24 = vector.broadcast %cst_15 : f32 to vector<128x128xf32>
      %25 = arith.maximumf %23, %24 : vector<128x128xf32>
      %26 = arith.truncf %25 : vector<128x128xf32> to vector<128x128xbf16>
      %c0_16 = arith.constant 0 : index
      %c0_17 = arith.constant 0 : index
      %27 = vector.load %arg6[%c0_16, %c0_17] : memref<128x128xbf16, #tpu.memory_space<vmem>>, vector<128x128xbf16>
      tpu.vector_store %arg6[%c0_16, %c0_17], %26 {strides = array<i32>} : memref<128x128xbf16, #tpu.memory_space<vmem>>, vector<128x128xbf16>,
    } else {
    }
    return
  }
  func.func @transform_0(%arg0: i32, %arg1: i32) -> (i32, i32) {
    %c0_i32 = arith.constant 0 : i32
    return %arg0, %arg1 : i32, i32
  }
  func.func @transform_1(%arg0: i32, %arg1: i32) -> (i32, i32) {
    %c0_i32 = arith.constant 0 : i32
    %c0_i32_0 = arith.constant 0 : i32
    %c0_i32_1 = arith.constant 0 : i32
    return %c0_i32, %c0_i32_0 : i32, i32
  }
  func.func @transform_2(%arg0: i32, %arg1: i32) -> (i32, i32) {
    %c1_i32 = arith.constant 1 : i32
    %c0_i32 = arith.constant 0 : i32
    return %arg0, %c1_i32 : i32, i32
  }
  func.func @transform_3(%arg0: i32, %arg1: i32) -> (i32, i32) {
    %c0_i32 = arith.constant 0 : i32
    %c0_i32_0 = arith.constant 0 : i32
    return %arg0, %c0_i32 : i32, i32
  }
  func.func @transform_4(%arg0: i32, %arg1: i32) -> (i32, i32) {
    %c0_i32 = arith.constant 0 : i32
    %c0_i32_0 = arith.constant 0 : i32
    return %arg0, %c0_i32 : i32, i32
  }
}

module attributes {stable_mosaic.version = 11 : i64} {
  func.func @_pool_kernel(%arg0: i32, %arg1: memref<128x1xi32, #tpu.memory_space<vmem>>, %arg2: memref<128x128xbf16, #tpu.memory_space<vmem>>, %arg3: memref<2x128xf32, #tpu.memory_space<vmem>>) attributes {dimension_semantics = [#tpu.dimension_semantics<arbitrary>], iteration_bounds = array<i64: 1>, scalar_prefetch = 0 : i64, scratch_operands = 0 : i64, tpu.core_type = #tpu.core_type<tc>, window_params = [{transform_indices = @transform_0, window_bounds = array<i64: 128, 1>}, {transform_indices = @transform_1, window_bounds = array<i64: 128, 128>}, {pipeline_mode = #tpu.pipeline_mode<synchronous>, transform_indices = @transform_2, window_bounds = array<i64: 2, 128>}]} {
    %c0_i32 = arith.constant 0 : i32
    %0 = arith.cmpi eq, %arg0, %c0_i32 : i32
    %1 = arith.extui %0 : i1 to i32
    %c0_i32_0 = arith.constant 0 : i32
    %2 = arith.cmpi ne, %1, %c0_i32_0 : i32
    scf.if %2 {
      %cst_15 = arith.constant -1.000000e+30 : f32
      %28 = vector.broadcast %cst_15 : f32 to vector<2x128xf32>
      %c0_16 = arith.constant 0 : index
      %c0_17 = arith.constant 0 : index
      %29 = vector.load %arg3[%c0_16, %c0_17] : memref<2x128xf32, #tpu.memory_space<vmem>>, vector<2x128xf32>
      tpu.vector_store %arg3[%c0_16, %c0_17], %28 {strides = array<i32>} : memref<2x128xf32, #tpu.memory_space<vmem>>, vector<2x128xf32>,
    } else {
    }
    %c0 = arith.constant 0 : index
    %c0_1 = arith.constant 0 : index
    %3 = vector.load %arg2[%c0, %c0_1] : memref<128x128xbf16, #tpu.memory_space<vmem>>, vector<128x128xbf16>
    %4 = arith.extf %3 : vector<128x128xbf16> to vector<128x128xf32>
    %c0_2 = arith.constant 0 : index
    %c0_3 = arith.constant 0 : index
    %5 = vector.load %arg1[%c0_2, %c0_3] : memref<128x1xi32, #tpu.memory_space<vmem>>, vector<128x1xi32>
    %c0_i32_4 = arith.constant 0 : i32
    %6 = vector.broadcast %c0_i32_4 : i32 to vector<128x1xi32>
    %7 = arith.cmpi eq, %5, %6 : vector<128x1xi32>
    %cst = arith.constant -1.000000e+30 : f32
    %8 = vector.shape_cast %7 : vector<128x1xi1> to vector<128x1xi1>
    %9 = vector.broadcast %8 : vector<128x1xi1> to vector<128x128xi1>
    %10 = vector.broadcast %cst : f32 to vector<128x128xf32>
    %11 = arith.select %9, %4, %10 : vector<128x128xi1>, vector<128x128xf32>
    %cst_5 = arith.constant dense<0xFF800000> : vector<128xf32>
    %12 = vector.multi_reduction <maximumf>, %11, %cst_5 [0] : vector<128x128xf32> to vector<128xf32>
    %13 = vector.shape_cast %12 : vector<128xf32> to vector<1x128xf32>
    %c0_6 = arith.constant 0 : index
    %c0_7 = arith.constant 0 : index
    %14 = vector.load %arg3[%c0_6, %c0_7] : memref<2x128xf32, #tpu.memory_space<vmem>>, vector<1x128xf32>
    %15 = arith.maximumf %14, %13 : vector<1x128xf32>
    %c0_8 = arith.constant 0 : index
    %c0_9 = arith.constant 0 : index
    %16 = vector.load %arg3[%c0_8, %c0_9] : memref<2x128xf32, #tpu.memory_space<vmem>>, vector<1x128xf32>
    tpu.vector_store %arg3[%c0_8, %c0_9], %15 {strides = array<i32>} : memref<2x128xf32, #tpu.memory_space<vmem>>, vector<1x128xf32>,
    %c1_i32 = arith.constant 1 : i32
    %17 = vector.broadcast %c1_i32 : i32 to vector<128x1xi32>
    %18 = arith.cmpi eq, %5, %17 : vector<128x1xi32>
    %cst_10 = arith.constant -1.000000e+30 : f32
    %19 = vector.shape_cast %18 : vector<128x1xi1> to vector<128x1xi1>
    %20 = vector.broadcast %19 : vector<128x1xi1> to vector<128x128xi1>
    %21 = vector.broadcast %cst_10 : f32 to vector<128x128xf32>
    %22 = arith.select %20, %4, %21 : vector<128x128xi1>, vector<128x128xf32>
    %cst_11 = arith.constant dense<0xFF800000> : vector<128xf32>
    %23 = vector.multi_reduction <maximumf>, %22, %cst_11 [0] : vector<128x128xf32> to vector<128xf32>
    %24 = vector.shape_cast %23 : vector<128xf32> to vector<1x128xf32>
    %c1 = arith.constant 1 : index
    %c0_12 = arith.constant 0 : index
    %25 = vector.load %arg3[%c1, %c0_12] : memref<2x128xf32, #tpu.memory_space<vmem>>, vector<1x128xf32>
    %26 = arith.maximumf %25, %24 : vector<1x128xf32>
    %c1_13 = arith.constant 1 : index
    %c0_14 = arith.constant 0 : index
    %27 = vector.load %arg3[%c1_13, %c0_14] : memref<2x128xf32, #tpu.memory_space<vmem>>, vector<1x128xf32>
    tpu.vector_store %arg3[%c1_13, %c0_14], %26 {strides = array<i32>} : memref<2x128xf32, #tpu.memory_space<vmem>>, vector<1x128xf32>,
    return
  }
  func.func @transform_0(%arg0: i32) -> (i32, i32) {
    %c0_i32 = arith.constant 0 : i32
    %c0_i32_0 = arith.constant 0 : i32
    return %arg0, %c0_i32 : i32, i32
  }
  func.func @transform_1(%arg0: i32) -> (i32, i32) {
    %c0_i32 = arith.constant 0 : i32
    %c0_i32_0 = arith.constant 0 : i32
    return %arg0, %c0_i32 : i32, i32
  }
  func.func @transform_2(%arg0: i32) -> (i32, i32) {
    %c0_i32 = arith.constant 0 : i32
    %c0_i32_0 = arith.constant 0 : i32
    %c0_i32_1 = arith.constant 0 : i32
    return %c0_i32, %c0_i32_0 : i32, i32
  }
}

</mosaic_0001>

<llo_original>
// kernel: graphsage_forward.7
$region0: #{graphsage_forward.7}
  #allocation0 [shape = 'u32[]', space=smem, size = 0x4, offset = 0x4, fixed_abs, tag = 'smem constant byte address 0x4 - core index']
  #allocation1 [shape = 'u32[72,128]{1,0:T(1,128)}', space=vmem, size = 0x9000, scoped, tag = 'internal scratch']
  %s0 = inlined_call_operand.vmem [shape: bf16[128,128], index: 0, kind: input, shape index: {}]
  %s1 = inlined_call_operand.vmem [shape: bf16[128,256], index: 1, kind: input, shape index: {}]
  %s2 = inlined_call_operand.vmem [shape: f32[1,256], index: 2, kind: input, shape index: {}]
  %s3 = inlined_call_operand.vmem [shape: bf16[128,256], index: 3, kind: output, shape index: {}]
  %s4 = sld [smem:[#allocation0]]
  $region22: #{graphsage_forward.7} parent=0
    _
  %s6 = ssub.s32 1, %s4
  %s7 = scalar_select 0, %s6, %s4
  // Predicated region
  $region2: #{graphsage_forward.7} parent=0 // pred_check
    _
  $region3: #{graphsage_forward.7} parent=0 // pred_check_branch
    %9 = sbr.rel (0) target = $region5
  $region4: #{graphsage_forward.7} parent=0 // pred_region
    _
  $region5: #{graphsage_forward.7} parent=0 // pred_fallthru
    _
  // Predicated region
  $region6: #{graphsage_forward.7} parent=0 // pred_check
    _
  $region7: #{graphsage_forward.7} parent=0 // pred_check_branch
    %11 = sbr.rel (0) target = $region9
  $region8: #{graphsage_forward.7} parent=0 // pred_region
    _
  $region9: #{graphsage_forward.7} parent=0 // pred_fallthru
    _
  // Predicated region
  $region10: #{graphsage_forward.7} parent=0 // pred_check
    _
  $region11: #{graphsage_forward.7} parent=0 // pred_check_branch
    %13 = sbr.rel (0) target = $region13
  $region12: #{graphsage_forward.7} parent=0 // pred_region
    _
  $region13: #{graphsage_forward.7} parent=0 // pred_fallthru
    _
  %v14 = vld [vmem:[%s0] sm:$0xf]
  %v15 = vld [vmem:[%s0 + $0x4] sm:$0xf]
  %v16 = vld [vmem:[%s0 + $0x8] sm:$0xf]
  %v17 = vld [vmem:[%s0 + $0xc] sm:$0xf]
  %v18 = vld [vmem:[%s0 + $0x10] sm:$0xf]
  %v19 = vld [vmem:[%s0 + $0x14] sm:$0xf]
  %v20 = vld [vmem:[%s0 + $0x18] sm:$0xf]
  %v21 = vld [vmem:[%s0 + $0x1c] sm:$0xf]
  %v22 = vld [vmem:[%s0 + $0x20] sm:$0xf]
  %v23 = vld [vmem:[%s0 + $0x24] sm:$0xf]
  %v24 = vld [vmem:[%s0 + $0x28] sm:$0xf]
  %v25 = vld [vmem:[%s0 + $0x2c] sm:$0xf]
  %v26 = vld [vmem:[%s0 + $0x30] sm:$0xf]
  %v27 = vld [vmem:[%s0 + $0x34] sm:$0xf]
  %v28 = vld [vmem:[%s0 + $0x38] sm:$0xf]
  %v29 = vld [vmem:[%s0 + $0x3c] sm:$0xf]
  %v30 = vld [vmem:[%s1] sm:$0xff]
  %v31 = vld [vmem:[%s1 + $0x8] sm:$0xff]
  %v32 = vld [vmem:[%s1 + $0x10] sm:$0xff]
  %v33 = vld [vmem:[%s1 + $0x18] sm:$0xff]
  %v34 = vld [vmem:[%s1 + $0x20] sm:$0xff]
  %v35 = vld [vmem:[%s1 + $0x28] sm:$0xff]
  %v36 = vld [vmem:[%s1 + $0x30] sm:$0xff]
  %v37 = vld [vmem:[%s1 + $0x38] sm:$0xff]
  %v38 = vld [vmem:[%s1 + $0x40] sm:$0xff]
  %v39 = vld [vmem:[%s1 + $0x48] sm:$0xff]
  %v40 = vld [vmem:[%s1 + $0x50] sm:$0xff]
  %v41 = vld [vmem:[%s1 + $0x58] sm:$0xff]
  %v42 = vld [vmem:[%s1 + $0x60] sm:$0xff]
  %v43 = vld [vmem:[%s1 + $0x68] sm:$0xff]
  %v44 = vld [vmem:[%s1 + $0x70] sm:$0xff]
  %v45 = vld [vmem:[%s1 + $0x78] sm:$0xff]
  %v46 = vld [vmem:[%s2] sm:$0x3]
  %v48 = vperm.slane %v46, 0
  %v49 = vperm.slane %v46, 1
  %v68 = vunpack.c.l.b16 %v14
  %v69 = vunpack.c.l.b16 %v15
  %v70 = vunpack.c.l.b16 %v16
  %v71 = vunpack.c.l.b16 %v17
  %v72 = vunpack.c.l.b16 %v18
  %v73 = vunpack.c.l.b16 %v19
  %v74 = vunpack.c.l.b16 %v20
  %v75 = vunpack.c.l.b16 %v21
  %v76 = vunpack.c.l.b16 %v22
  %v77 = vunpack.c.l.b16 %v23
  %v78 = vunpack.c.l.b16 %v24
  %v79 = vunpack.c.l.b16 %v25
  %v80 = vunpack.c.l.b16 %v26
  %v81 = vunpack.c.l.b16 %v27
  %v82 = vunpack.c.l.b16 %v28
  %v83 = vunpack.c.l.b16 %v29
  %v84 = vpack.c.b16 %v69, %v68
  %v85 = vpack.c.b16 %v71, %v70
  %v86 = vpack.c.b16 %v73, %v72
  %v87 = vpack.c.b16 %v75, %v74
  %v88 = vpack.c.b16 %v77, %v76
  %v89 = vpack.c.b16 %v79, %v78
  %v90 = vpack.c.b16 %v81, %v80
  %v91 = vpack.c.b16 %v83, %v82
  %v116 = vunpack.c.l.b16 %v30
  %v117 = vunpack.c.h.b16 %v30
  %v118 = vunpack.c.l.b16 %v31
  %v119 = vunpack.c.h.b16 %v31
  %v120 = vunpack.c.l.b16 %v32
  %v121 = vunpack.c.h.b16 %v32
  %v122 = vunpack.c.l.b16 %v33
  %v123 = vunpack.c.h.b16 %v33
  %v124 = vunpack.c.l.b16 %v34
  %v125 = vunpack.c.h.b16 %v34
  %v126 = vunpack.c.l.b16 %v35
  %v127 = vunpack.c.h.b16 %v35
  %v128 = vunpack.c.l.b16 %v36
  %v129 = vunpack.c.h.b16 %v36
  %v130 = vunpack.c.l.b16 %v37
  %v131 = vunpack.c.h.b16 %v37
  %v132 = vunpack.c.l.b16 %v38
  %v133 = vunpack.c.h.b16 %v38
  %v134 = vunpack.c.l.b16 %v39
  %v135 = vunpack.c.h.b16 %v39
  %v136 = vunpack.c.l.b16 %v40
  %v137 = vunpack.c.h.b16 %v40
  %v138 = vunpack.c.l.b16 %v41
  %v139 = vunpack.c.h.b16 %v41
  %v140 = vunpack.c.l.b16 %v42
  %v141 = vunpack.c.h.b16 %v42
  %v142 = vunpack.c.l.b16 %v43
  %v143 = vunpack.c.h.b16 %v43
  %v144 = vunpack.c.l.b16 %v44
  %v145 = vunpack.c.h.b16 %v44
  %v146 = vunpack.c.l.b16 %v45
  %v147 = vunpack.c.h.b16 %v45
  %v148 = vpack.c.b16 %v118, %v116
  %v149 = vpack.c.b16 %v119, %v117
  %v150 = vpack.c.b16 %v122, %v120
  %v151 = vpack.c.b16 %v123, %v121
  %v152 = vpack.c.b16 %v126, %v124
  %v153 = vpack.c.b16 %v127, %v125
  %v154 = vpack.c.b16 %v130, %v128
  %v155 = vpack.c.b16 %v131, %v129
  %v156 = vpack.c.b16 %v134, %v132
  %v157 = vpack.c.b16 %v135, %v133
  %v158 = vpack.c.b16 %v138, %v136
  %v159 = vpack.c.b16 %v139, %v137
  %v160 = vpack.c.b16 %v142, %v140
  %v161 = vpack.c.b16 %v143, %v141
  %v162 = vpack.c.b16 %v146, %v144
  %v163 = vpack.c.b16 %v147, %v145
  %180 = vmatpush.bf16.msra.mxu0 %v162
  %181 = vmatpush.bf16.msra.mxu0 %v160
  %182 = vmatpush.bf16.msra.mxu0 %v158
  %183 = vmatpush.bf16.msra.mxu0 %v156
  %184 = vmatpush.bf16.msra.mxu0 %v154
  %185 = vmatpush.bf16.msra.mxu0 %v152
  %186 = vmatpush.bf16.msra.mxu0 %v150
  %187 = vmatpush.bf16.msra.mxu0 %v148
  %188 = vmatmul.bf16.gmra.mxu0 %v84
  %v189 = vpop.f32.mrf.mxu0
  %v190 = vadd.f32 %v48, %v189
  %v191 = vpop.f32.mrf.mxu0
  %v192 = vadd.f32 %v48, %v191
  %193 = vmatmul.bf16.gmra.mxu0 %v85
  %v194 = vpop.f32.mrf.mxu0
  %v195 = vadd.f32 %v48, %v194
  %v196 = vpop.f32.mrf.mxu0
  %v197 = vadd.f32 %v48, %v196
  %198 = vmatmul.bf16.gmra.mxu0 %v86
  %v199 = vpop.f32.mrf.mxu0
  %v200 = vadd.f32 %v48, %v199
  %v201 = vpop.f32.mrf.mxu0
  %v202 = vadd.f32 %v48, %v201
  %203 = vmatmul.bf16.gmra.mxu0 %v87
  %v204 = vpop.f32.mrf.mxu0
  %v205 = vadd.f32 %v48, %v204
  %v206 = vpop.f32.mrf.mxu0
  %v207 = vadd.f32 %v48, %v206
  %208 = vmatmul.bf16.gmra.mxu0 %v88
  %v209 = vpop.f32.mrf.mxu0
  %v210 = vadd.f32 %v48, %v209
  %v211 = vpop.f32.mrf.mxu0
  %v212 = vadd.f32 %v48, %v211
  %213 = vmatmul.bf16.gmra.mxu0 %v89
  %v214 = vpop.f32.mrf.mxu0
  %v215 = vadd.f32 %v48, %v214
  %v216 = vpop.f32.mrf.mxu0
  %v217 = vadd.f32 %v48, %v216
  %218 = vmatmul.bf16.gmra.mxu0 %v90
  %v219 = vpop.f32.mrf.mxu0
  %v220 = vadd.f32 %v48, %v219
  %v221 = vpop.f32.mrf.mxu0
  %v222 = vadd.f32 %v48, %v221
  %223 = vmatmul.bf16.gmra.mxu0 %v91
  %v224 = vpop.f32.mrf.mxu0
  %v225 = vadd.f32 %v48, %v224
  %v226 = vpop.f32.mrf.mxu0
  %v227 = vadd.f32 %v48, %v226
  %228 = vdwg.mxu0
  %229 = vmatpush.bf16.msra.mxu0 %v163
  %230 = vmatpush.bf16.msra.mxu0 %v161
  %231 = vmatpush.bf16.msra.mxu0 %v159
  %232 = vmatpush.bf16.msra.mxu0 %v157
  %233 = vmatpush.bf16.msra.mxu0 %v155
  %234 = vmatpush.bf16.msra.mxu0 %v153
  %235 = vmatpush.bf16.msra.mxu0 %v151
  %236 = vmatpush.bf16.msra.mxu0 %v149
  %237 = vmatmul.bf16.gmra.mxu0 %v84
  %v238 = vpop.f32.mrf.mxu0
  %v239 = vadd.f32 %v49, %v238
  %v240 = vpop.f32.mrf.mxu0
  %v241 = vadd.f32 %v49, %v240
  %242 = vmatmul.bf16.gmra.mxu0 %v85
  %v243 = vpop.f32.mrf.mxu0
  %v244 = vadd.f32 %v49, %v243
  %v245 = vpop.f32.mrf.mxu0
  %v246 = vadd.f32 %v49, %v245
  %247 = vmatmul.bf16.gmra.mxu0 %v86
  %v248 = vpop.f32.mrf.mxu0
  %v249 = vadd.f32 %v49, %v248
  %v250 = vpop.f32.mrf.mxu0
  %v251 = vadd.f32 %v49, %v250
  %252 = vmatmul.bf16.gmra.mxu0 %v87
  %v253 = vpop.f32.mrf.mxu0
  %v254 = vadd.f32 %v49, %v253
  %v255 = vpop.f32.mrf.mxu0
  %v256 = vadd.f32 %v49, %v255
  %257 = vmatmul.bf16.gmra.mxu0 %v88
  %v258 = vpop.f32.mrf.mxu0
  %v259 = vadd.f32 %v49, %v258
  %v260 = vpop.f32.mrf.mxu0
  %v261 = vadd.f32 %v49, %v260
  %262 = vmatmul.bf16.gmra.mxu0 %v89
  %v263 = vpop.f32.mrf.mxu0
  %v264 = vadd.f32 %v49, %v263
  %v265 = vpop.f32.mrf.mxu0
  %v266 = vadd.f32 %v49, %v265
  %267 = vmatmul.bf16.gmra.mxu0 %v90
  %v268 = vpop.f32.mrf.mxu0
  %v269 = vadd.f32 %v49, %v268
  %v270 = vpop.f32.mrf.mxu0
  %v271 = vadd.f32 %v49, %v270
  %272 = vmatmul.bf16.gmra.mxu0 %v91
  %v273 = vpop.f32.mrf.mxu0
  %v274 = vadd.f32 %v49, %v273
  %v275 = vpop.f32.mrf.mxu0
  %v276 = vadd.f32 %v49, %v275
  %277 = vdwg.mxu0
  %v278 = vpack.c.bf16 %v239, %v190
  %v279 = vpack.c.bf16 %v241, %v192
  %v280 = vpack.c.bf16 %v244, %v195
  %v281 = vpack.c.bf16 %v246, %v197
  %v282 = vpack.c.bf16 %v249, %v200
  %v283 = vpack.c.bf16 %v251, %v202
  %v284 = vpack.c.bf16 %v254, %v205
  %v285 = vpack.c.bf16 %v256, %v207
  %v286 = vpack.c.bf16 %v259, %v210
  %v287 = vpack.c.bf16 %v261, %v212
  %v288 = vpack.c.bf16 %v264, %v215
  %v289 = vpack.c.bf16 %v266, %v217
  %v290 = vpack.c.bf16 %v269, %v220
  %v291 = vpack.c.bf16 %v271, %v222
  %v292 = vpack.c.bf16 %v274, %v225
  %v293 = vpack.c.bf16 %v276, %v227
  %294 = vst [vmem:[%s3] sm:$0xff] %v278
  %295 = vst [vmem:[%s3 + $0x8] sm:$0xff] %v279
  %296 = vst [vmem:[%s3 + $0x10] sm:$0xff] %v280
  %297 = vst [vmem:[%s3 + $0x18] sm:$0xff] %v281
  %298 = vst [vmem:[%s3 + $0x20] sm:$0xff] %v282
  %299 = vst [vmem:[%s3 + $0x28] sm:$0xff] %v283
  %300 = vst [vmem:[%s3 + $0x30] sm:$0xff] %v284
  %301 = vst [vmem:[%s3 + $0x38] sm:$0xff] %v285
  %302 = vst [vmem:[%s3 + $0x40] sm:$0xff] %v286
  %303 = vst [vmem:[%s3 + $0x48] sm:$0xff] %v287
  %304 = vst [vmem:[%s3 + $0x50] sm:$0xff] %v288
  %305 = vst [vmem:[%s3 + $0x58] sm:$0xff] %v289
  %306 = vst [vmem:[%s3 + $0x60] sm:$0xff] %v290
  %307 = vst [vmem:[%s3 + $0x68] sm:$0xff] %v291
  %308 = vst [vmem:[%s3 + $0x70] sm:$0xff] %v292
  %309 = vst [vmem:[%s3 + $0x78] sm:$0xff] %v293
  // Predicated region
  $region14: #{graphsage_forward.7} parent=0 // pred_check
    _
  $region15: #{graphsage_forward.7} parent=0 // pred_check_branch
    %311 = sbr.rel (0) target = $region17
  $region16: #{graphsage_forward.7} parent=0 // pred_region
    _
  $region17: #{graphsage_forward.7} parent=0 // pred_fallthru
    _
  // Predicated region
  $region18: #{graphsage_forward.7} parent=0 // pred_check
    _
  $region19: #{graphsage_forward.7} parent=0 // pred_check_branch
    %313 = sbr.rel (0) target = $region21
  $region20: #{graphsage_forward.7} parent=0 // pred_region
    _
  $region21: #{graphsage_forward.7} parent=0 // pred_fallthru
    _

// kernel: graphsage_forward.8
$region0: #{graphsage_forward.8}
  #allocation0 [shape = 'u32[]', space=smem, size = 0x4, offset = 0x4, fixed_abs, tag = 'smem constant byte address 0x4 - core index']
  #allocation1 [shape = 'u32[72,128]{1,0:T(1,128)}', space=vmem, size = 0x9000, scoped, tag = 'internal scratch']
  #allocation2 [shape = 'f32[128,128]{1,0:T(8,128)}', space=vmem, size = 0x10000, scoped, tag = 'scratch operand']
  %s0 = inlined_call_operand.vmem [shape: s8[128,128], index: 0, kind: input, shape index: {}]
  %s1 = inlined_call_operand.vmem [shape: bf16[128,256], index: 1, kind: input, shape index: {}, may-alias: {1,2}]
  %s2 = inlined_call_operand.vmem [shape: bf16[128,256], index: 2, kind: input, shape index: {}, may-alias: {1,2}]
  %s3 = inlined_call_operand.vmem [shape: f32[128,1], index: 3, kind: input, shape index: {}]
  %s4 = inlined_call_operand.vmem [shape: bf16[128,128], index: 4, kind: output, shape index: {}]
  %s5 = sld [smem:[#allocation0]]
  $region116: #{graphsage_forward.8} parent=0
    _
  %s7 = ssub.s32 1, %s5
  %s8 = scalar_select 0, %s7, %s5
  $region1: #{graphsage_forward.8} parent=0
    #allocation3 [shape = 'u8[32768]{0}', space=vmem, size = 0x8000, scoped, tag = 'input window, operand 1, single buffered']
    #allocation4 [shape = 'u8[32768]{0}', space=vmem, size = 0x8000, scoped, tag = 'input window, operand 2, single buffered']
    // Predicated region
    $region2: #{graphsage_forward.8} parent=1 // pred_check
      _
    $region3: #{graphsage_forward.8} parent=1 // pred_check_branch
      %10 = sbr.rel (0) target = $region5
    $region4: #{graphsage_forward.8} parent=1 // pred_region
      _
    $region5: #{graphsage_forward.8} parent=1 // pred_fallthru
      _
    // Predicated region
    $region6: #{graphsage_forward.8} parent=1 // pred_check
      _
    $region7: #{graphsage_forward.8} parent=1 // pred_check_branch
      %12 = sbr.rel (0) target = $region9
    $region8: #{graphsage_forward.8} parent=1 // pred_region
      // Predicated region
      $region10: #{graphsage_forward.8} parent=8 // pred_check
        _
      $region11: #{graphsage_forward.8} parent=8 // pred_check_branch
        %14 = sbr.rel (0) target = $region13
      $region12: #{graphsage_forward.8} parent=8 // pred_region
        // Predicated region
        $region14: #{graphsage_forward.8} parent=12 // pred_check
          _
        $region15: #{graphsage_forward.8} parent=12 // pred_check_branch
          %16 = sbr.rel target = $region17
        $region16: #{graphsage_forward.8} parent=12 // pred_region
          // Predicated region
          $region29: #{graphsage_forward.8} parent=16 // pred_check
            _
          $region30: #{graphsage_forward.8} parent=16 // pred_check_branch
            %62 = sbr.rel (0) target = $region32
          $region31: #{graphsage_forward.8} parent=16 // pred_region
            loop: start=0, step=1, limit=1
            $region33: #{graphsage_forward.8} parent=31 // loop_pre_header
              _
            $region34: #{graphsage_forward.8} parent=31 // loop_header
              %s64 = sphi 0, %s68
              %p65 = scmp.ge.s32.totalorder %s64, 1
              %s69 = sphi %s1, %s1
              %s70 = sphi [#allocation3], [#allocation3]
            $region35: #{graphsage_forward.8} parent=31 // loop_header_branch
              %67 = sbr.rel (%p65) target = $region39
            $region36: #{graphsage_forward.8} parent=31 // loop_body
              _
            $region37: #{graphsage_forward.8} parent=31 // loop_footer
              %s68 = sadd.s32 1, %s64
            $region38: #{graphsage_forward.8} parent=31 // loop_footer_branch
              %63 = sbr.rel target = $region34
            $region39: #{graphsage_forward.8} parent=31 // loop_exit
              _
            %s72 = ssub.s32 16, 1
            loop: start=0, step=1, limit=1
            $region40: #{graphsage_forward.8} parent=31 // loop_pre_header
              _
            $region41: #{graphsage_forward.8} parent=31 // loop_header
              %s74 = sphi 0, %s78
              %p75 = scmp.ge.s32.totalorder %s74, 1
              %s79 = sphi %s1, %s1
              %s80 = sphi [#allocation3], [#allocation3]
            $region42: #{graphsage_forward.8} parent=31 // loop_header_branch
              %77 = sbr.rel (%p75) target = $region46
            $region43: #{graphsage_forward.8} parent=31 // loop_body
              %v81 = vld [vmem:[%s79] sm:%s72]
              %82 = vst [vmem:[%s80] sm:%s72] %v81
              %v83 = vld [vmem:[%s79 + $0x8] sm:%s72]
              %84 = vst [vmem:[%s80 + $0x4] sm:%s72] %v83
              %v85 = vld [vmem:[%s79 + $0x10] sm:%s72]
              %86 = vst [vmem:[%s80 + $0x8] sm:%s72] %v85
              %v87 = vld [vmem:[%s79 + $0x18] sm:%s72]
              %88 = vst [vmem:[%s80 + $0xc] sm:%s72] %v87
              %v89 = vld [vmem:[%s79 + $0x20] sm:%s72]
              %90 = vst [vmem:[%s80 + $0x10] sm:%s72] %v89
              %v91 = vld [vmem:[%s79 + $0x28] sm:%s72]
              %92 = vst [vmem:[%s80 + $0x14] sm:%s72] %v91
              %v93 = vld [vmem:[%s79 + $0x30] sm:%s72]
              %94 = vst [vmem:[%s80 + $0x18] sm:%s72] %v93
              %v95 = vld [vmem:[%s79 + $0x38] sm:%s72]
              %96 = vst [vmem:[%s80 + $0x1c] sm:%s72] %v95
              %v97 = vld [vmem:[%s79 + $0x40] sm:%s72]
              %98 = vst [vmem:[%s80 + $0x20] sm:%s72] %v97
              %v99 = vld [vmem:[%s79 + $0x48] sm:%s72]
              %100 = vst [vmem:[%s80 + $0x24] sm:%s72] %v99
              %v101 = vld [vmem:[%s79 + $0x50] sm:%s72]
              %102 = vst [vmem:[%s80 + $0x28] sm:%s72] %v101
              %v103 = vld [vmem:[%s79 + $0x58] sm:%s72]
              %104 = vst [vmem:[%s80 + $0x2c] sm:%s72] %v103
              %v105 = vld [vmem:[%s79 + $0x60] sm:%s72]
              %106 = vst [vmem:[%s80 + $0x30] sm:%s72] %v105
              %v107 = vld [vmem:[%s79 + $0x68] sm:%s72]
              %108 = vst [vmem:[%s80 + $0x34] sm:%s72] %v107
              %v109 = vld [vmem:[%s79 + $0x70] sm:%s72]
              %110 = vst [vmem:[%s80 + $0x38] sm:%s72] %v109
              %v111 = vld [vmem:[%s79 + $0x78] sm:%s72]
              %112 = vst [vmem:[%s80 + $0x3c] sm:%s72] %v111
            $region44: #{graphsage_forward.8} parent=31 // loop_footer
              %s78 = sadd.s32 1, %s74
            $region45: #{graphsage_forward.8} parent=31 // loop_footer_branch
              %73 = sbr.rel target = $region41
            $region46: #{graphsage_forward.8} parent=31 // loop_exit
              _
          $region32: #{graphsage_forward.8} parent=16 // pred_fallthru
            _
        $region17: #{graphsage_forward.8} parent=12 // pred_fallthru
          _
        // Predicated region
        $region18: #{graphsage_forward.8} parent=12 // pred_check
          _
        $region19: #{graphsage_forward.8} parent=12 // pred_check_branch
          %18 = sbr.rel (0) target = $region21
        $region20: #{graphsage_forward.8} parent=12 // pred_region
          %s20 = ssub.s32 16, 1
          loop: start=0, step=1, limit=1
          $region22: #{graphsage_forward.8} parent=20 // loop_pre_header
            _
          $region23: #{graphsage_forward.8} parent=20 // loop_header
            %s22 = sphi 0, %s26
            %p23 = scmp.ge.s32.totalorder %s22, 1
            %s27 = sphi %s1, %s1
            %s28 = sphi [#allocation3], [#allocation3]
          $region24: #{graphsage_forward.8} parent=20 // loop_header_branch
            %25 = sbr.rel (%p23) target = $region28
          $region25: #{graphsage_forward.8} parent=20 // loop_body
            %v29 = vld [vmem:[%s27] sm:%s20]
            %30 = vst [vmem:[%s28] sm:%s20] %v29
            %v31 = vld [vmem:[%s27 + $0x8] sm:%s20]
            %32 = vst [vmem:[%s28 + $0x4] sm:%s20] %v31
            %v33 = vld [vmem:[%s27 + $0x10] sm:%s20]
            %34 = vst [vmem:[%s28 + $0x8] sm:%s20] %v33
            %v35 = vld [vmem:[%s27 + $0x18] sm:%s20]
            %36 = vst [vmem:[%s28 + $0xc] sm:%s20] %v35
            %v37 = vld [vmem:[%s27 + $0x20] sm:%s20]
            %38 = vst [vmem:[%s28 + $0x10] sm:%s20] %v37
            %v39 = vld [vmem:[%s27 + $0x28] sm:%s20]
            %40 = vst [vmem:[%s28 + $0x14] sm:%s20] %v39
            %v41 = vld [vmem:[%s27 + $0x30] sm:%s20]
            %42 = vst [vmem:[%s28 + $0x18] sm:%s20] %v41
            %v43 = vld [vmem:[%s27 + $0x38] sm:%s20]
            %44 = vst [vmem:[%s28 + $0x1c] sm:%s20] %v43
            %v45 = vld [vmem:[%s27 + $0x40] sm:%s20]
            %46 = vst [vmem:[%s28 + $0x20] sm:%s20] %v45
            %v47 = vld [vmem:[%s27 + $0x48] sm:%s20]
            %48 = vst [vmem:[%s28 + $0x24] sm:%s20] %v47
            %v49 = vld [vmem:[%s27 + $0x50] sm:%s20]
            %50 = vst [vmem:[%s28 + $0x28] sm:%s20] %v49
            %v51 = vld [vmem:[%s27 + $0x58] sm:%s20]
            %52 = vst [vmem:[%s28 + $0x2c] sm:%s20] %v51
            %v53 = vld [vmem:[%s27 + $0x60] sm:%s20]
            %54 = vst [vmem:[%s28 + $0x30] sm:%s20] %v53
            %v55 = vld [vmem:[%s27 + $0x68] sm:%s20]
            %56 = vst [vmem:[%s28 + $0x34] sm:%s20] %v55
            %v57 = vld [vmem:[%s27 + $0x70] sm:%s20]
            %58 = vst [vmem:[%s28 + $0x38] sm:%s20] %v57
            %v59 = vld [vmem:[%s27 + $0x78] sm:%s20]
            %60 = vst [vmem:[%s28 + $0x3c] sm:%s20] %v59
          $region26: #{graphsage_forward.8} parent=20 // loop_footer
            %s26 = sadd.s32 1, %s22
          $region27: #{graphsage_forward.8} parent=20 // loop_footer_branch
            %21 = sbr.rel target = $region23
          $region28: #{graphsage_forward.8} parent=20 // loop_exit
            _
        $region21: #{graphsage_forward.8} parent=12 // pred_fallthru
          _
      $region13: #{graphsage_forward.8} parent=8 // pred_fallthru
        _
      %113 = vnop
    $region9: #{graphsage_forward.8} parent=1 // pred_fallthru
      _
    // Predicated region
    $region47: #{graphsage_forward.8} parent=1 // pred_check
      _
    $region48: #{graphsage_forward.8} parent=1 // pred_check_branch
      %115 = sbr.rel (0) target = $region50
    $region49: #{graphsage_forward.8} parent=1 // pred_region
      %s116 = scalar_lea.vmem %s2, 4
      // Predicated region
      $region51: #{graphsage_forward.8} parent=49 // pred_check
        _
      $region52: #{graphsage_forward.8} parent=49 // pred_check_branch
        %118 = sbr.rel (0) target = $region54
      $region53: #{graphsage_forward.8} parent=49 // pred_region
        // Predicated region
        $region55: #{graphsage_forward.8} parent=53 // pred_check
          _
        $region56: #{graphsage_forward.8} parent=53 // pred_check_branch
          %120 = sbr.rel target = $region58
        $region57: #{graphsage_forward.8} parent=53 // pred_region
          // Predicated region
          $region70: #{graphsage_forward.8} parent=57 // pred_check
            _
          $region71: #{graphsage_forward.8} parent=57 // pred_check_branch
            %166 = sbr.rel (0) target = $region73
          $region72: #{graphsage_forward.8} parent=57 // pred_region
            loop: start=0, step=1, limit=1
            $region74: #{graphsage_forward.8} parent=72 // loop_pre_header
              _
            $region75: #{graphsage_forward.8} parent=72 // loop_header
              %s168 = sphi 0, %s172
              %p169 = scmp.ge.s32.totalorder %s168, 1
              %s173 = sphi %s116, %s116
              %s174 = sphi [#allocation4], [#allocation4]
            $region76: #{graphsage_forward.8} parent=72 // loop_header_branch
              %171 = sbr.rel (%p169) target = $region80
            $region77: #{graphsage_forward.8} parent=72 // loop_body
              _
            $region78: #{graphsage_forward.8} parent=72 // loop_footer
              %s172 = sadd.s32 1, %s168
            $region79: #{graphsage_forward.8} parent=72 // loop_footer_branch
              %167 = sbr.rel target = $region75
            $region80: #{graphsage_forward.8} parent=72 // loop_exit
              _
            %s176 = ssub.s32 16, 1
            loop: start=0, step=1, limit=1
            $region81: #{graphsage_forward.8} parent=72 // loop_pre_header
              _
            $region82: #{graphsage_forward.8} parent=72 // loop_header
              %s178 = sphi 0, %s182
              %p179 = scmp.ge.s32.totalorder %s178, 1
              %s183 = sphi %s116, %s116
              %s184 = sphi [#allocation4], [#allocation4]
            $region83: #{graphsage_forward.8} parent=72 // loop_header_branch
              %181 = sbr.rel (%p179) target = $region87
            $region84: #{graphsage_forward.8} parent=72 // loop_body
              %v185 = vld [vmem:[%s183] sm:%s176]
              %186 = vst [vmem:[%s184] sm:%s176] %v185
              %v187 = vld [vmem:[%s183 + $0x8] sm:%s176]
              %188 = vst [vmem:[%s184 + $0x4] sm:%s176] %v187
              %v189 = vld [vmem:[%s183 + $0x10] sm:%s176]
              %190 = vst [vmem:[%s184 + $0x8] sm:%s176] %v189
              %v191 = vld [vmem:[%s183 + $0x18] sm:%s176]
              %192 = vst [vmem:[%s184 + $0xc] sm:%s176] %v191
              %v193 = vld [vmem:[%s183 + $0x20] sm:%s176]
              %194 = vst [vmem:[%s184 + $0x10] sm:%s176] %v193
              %v195 = vld [vmem:[%s183 + $0x28] sm:%s176]
              %196 = vst [vmem:[%s184 + $0x14] sm:%s176] %v195
              %v197 = vld [vmem:[%s183 + $0x30] sm:%s176]
              %198 = vst [vmem:[%s184 + $0x18] sm:%s176] %v197
              %v199 = vld [vmem:[%s183 + $0x38] sm:%s176]
              %200 = vst [vmem:[%s184 + $0x1c] sm:%s176] %v199
              %v201 = vld [vmem:[%s183 + $0x40] sm:%s176]
              %202 = vst [vmem:[%s184 + $0x20] sm:%s176] %v201
              %v203 = vld [vmem:[%s183 + $0x48] sm:%s176]
              %204 = vst [vmem:[%s184 + $0x24] sm:%s176] %v203
              %v205 = vld [vmem:[%s183 + $0x50] sm:%s176]
              %206 = vst [vmem:[%s184 + $0x28] sm:%s176] %v205
              %v207 = vld [vmem:[%s183 + $0x58] sm:%s176]
              %208 = vst [vmem:[%s184 + $0x2c] sm:%s176] %v207
              %v209 = vld [vmem:[%s183 + $0x60] sm:%s176]
              %210 = vst [vmem:[%s184 + $0x30] sm:%s176] %v209
              %v211 = vld [vmem:[%s183 + $0x68] sm:%s176]
              %212 = vst [vmem:[%s184 + $0x34] sm:%s176] %v211
              %v213 = vld [vmem:[%s183 + $0x70] sm:%s176]
              %214 = vst [vmem:[%s184 + $0x38] sm:%s176] %v213
              %v215 = vld [vmem:[%s183 + $0x78] sm:%s176]
              %216 = vst [vmem:[%s184 + $0x3c] sm:%s176] %v215
            $region85: #{graphsage_forward.8} parent=72 // loop_footer
              %s182 = sadd.s32 1, %s178
            $region86: #{graphsage_forward.8} parent=72 // loop_footer_branch
              %177 = sbr.rel target = $region82
            $region87: #{graphsage_forward.8} parent=72 // loop_exit
              _
          $region73: #{graphsage_forward.8} parent=57 // pred_fallthru
            _
        $region58: #{graphsage_forward.8} parent=53 // pred_fallthru
          _
        // Predicated region
        $region59: #{graphsage_forward.8} parent=53 // pred_check
          _
        $region60: #{graphsage_forward.8} parent=53 // pred_check_branch
          %122 = sbr.rel (0) target = $region62
        $region61: #{graphsage_forward.8} parent=53 // pred_region
          %s124 = ssub.s32 16, 1
          loop: start=0, step=1, limit=1
          $region63: #{graphsage_forward.8} parent=61 // loop_pre_header
            _
          $region64: #{graphsage_forward.8} parent=61 // loop_header
            %s126 = sphi 0, %s130
            %p127 = scmp.ge.s32.totalorder %s126, 1
            %s131 = sphi %s116, %s116
            %s132 = sphi [#allocation4], [#allocation4]
          $region65: #{graphsage_forward.8} parent=61 // loop_header_branch
            %129 = sbr.rel (%p127) target = $region69
          $region66: #{graphsage_forward.8} parent=61 // loop_body
            %v133 = vld [vmem:[%s131] sm:%s124]
            %134 = vst [vmem:[%s132] sm:%s124] %v133
            %v135 = vld [vmem:[%s131 + $0x8] sm:%s124]
            %136 = vst [vmem:[%s132 + $0x4] sm:%s124] %v135
            %v137 = vld [vmem:[%s131 + $0x10] sm:%s124]
            %138 = vst [vmem:[%s132 + $0x8] sm:%s124] %v137
            %v139 = vld [vmem:[%s131 + $0x18] sm:%s124]
            %140 = vst [vmem:[%s132 + $0xc] sm:%s124] %v139
            %v141 = vld [vmem:[%s131 + $0x20] sm:%s124]
            %142 = vst [vmem:[%s132 + $0x10] sm:%s124] %v141
            %v143 = vld [vmem:[%s131 + $0x28] sm:%s124]
            %144 = vst [vmem:[%s132 + $0x14] sm:%s124] %v143
            %v145 = vld [vmem:[%s131 + $0x30] sm:%s124]
            %146 = vst [vmem:[%s132 + $0x18] sm:%s124] %v145
            %v147 = vld [vmem:[%s131 + $0x38] sm:%s124]
            %148 = vst [vmem:[%s132 + $0x1c] sm:%s124] %v147
            %v149 = vld [vmem:[%s131 + $0x40] sm:%s124]
            %150 = vst [vmem:[%s132 + $0x20] sm:%s124] %v149
            %v151 = vld [vmem:[%s131 + $0x48] sm:%s124]
            %152 = vst [vmem:[%s132 + $0x24] sm:%s124] %v151
            %v153 = vld [vmem:[%s131 + $0x50] sm:%s124]
            %154 = vst [vmem:[%s132 + $0x28] sm:%s124] %v153
            %v155 = vld [vmem:[%s131 + $0x58] sm:%s124]
            %156 = vst [vmem:[%s132 + $0x2c] sm:%s124] %v155
            %v157 = vld [vmem:[%s131 + $0x60] sm:%s124]
            %158 = vst [vmem:[%s132 + $0x30] sm:%s124] %v157
            %v159 = vld [vmem:[%s131 + $0x68] sm:%s124]
            %160 = vst [vmem:[%s132 + $0x34] sm:%s124] %v159
            %v161 = vld [vmem:[%s131 + $0x70] sm:%s124]
            %162 = vst [vmem:[%s132 + $0x38] sm:%s124] %v161
            %v163 = vld [vmem:[%s131 + $0x78] sm:%s124]
            %164 = vst [vmem:[%s132 + $0x3c] sm:%s124] %v163
          $region67: #{graphsage_forward.8} parent=61 // loop_footer
            %s130 = sadd.s32 1, %s126
          $region68: #{graphsage_forward.8} parent=61 // loop_footer_branch
            %125 = sbr.rel target = $region64
          $region69: #{graphsage_forward.8} parent=61 // loop_exit
            _
        $region62: #{graphsage_forward.8} parent=53 // pred_fallthru
          _
      $region54: #{graphsage_forward.8} parent=49 // pred_fallthru
        _
      %217 = vnop
    $region50: #{graphsage_forward.8} parent=1 // pred_fallthru
      _
    // Predicated region
    $region88: #{graphsage_forward.8} parent=1 // pred_check
      _
    $region89: #{graphsage_forward.8} parent=1 // pred_check_branch
      %219 = sbr.rel (0) target = $region91
    $region90: #{graphsage_forward.8} parent=1 // pred_region
      _
    $region91: #{graphsage_forward.8} parent=1 // pred_fallthru
      _
    // Predicated region
    $region92: #{graphsage_forward.8} parent=1 // pred_check
      _
    $region93: #{graphsage_forward.8} parent=1 // pred_check_branch
      %221 = sbr.rel (0) target = $region95
    $region94: #{graphsage_forward.8} parent=1 // pred_region
      _
    $region95: #{graphsage_forward.8} parent=1 // pred_fallthru
      _
    // Predicated region
    $region96: #{graphsage_forward.8} parent=1 // pred_check
      _
    $region97: #{graphsage_forward.8} parent=1 // pred_check_branch
      %223 = sbr.rel (0) target = $region99
    $region98: #{graphsage_forward.8} parent=1 // pred_region
      _
    $region99: #{graphsage_forward.8} parent=1 // pred_fallthru
      _
    %p224 = scmp.eq.s32.totalorder 0, 0
    // Predicated region
    $region100: #{graphsage_forward.8} parent=1 // pred_check
      %p225 = pneg %p224
    $region101: #{graphsage_forward.8} parent=1 // pred_check_branch
      %227 = sbr.rel (%p225) target = $region103
    $region102: #{graphsage_forward.8} parent=1 // pred_region
      %228 = vst [vmem:[#allocation2] sm:$0xff] 0.0
      %229 = vst [vmem:[#allocation2 + $0x8] sm:$0xff] 0.0
      %230 = vst [vmem:[#allocation2 + $0x10] sm:$0xff] 0.0
      %231 = vst [vmem:[#allocation2 + $0x18] sm:$0xff] 0.0
      %232 = vst [vmem:[#allocation2 + $0x20] sm:$0xff] 0.0
      %233 = vst [vmem:[#allocation2 + $0x28] sm:$0xff] 0.0
      %234 = vst [vmem:[#allocation2 + $0x30] sm:$0xff] 0.0
      %235 = vst [vmem:[#allocation2 + $0x38] sm:$0xff] 0.0
      %236 = vst [vmem:[#allocation2 + $0x40] sm:$0xff] 0.0
      %237 = vst [vmem:[#allocation2 + $0x48] sm:$0xff] 0.0
      %238 = vst [vmem:[#allocation2 + $0x50] sm:$0xff] 0.0
      %239 = vst [vmem:[#allocation2 + $0x58] sm:$0xff] 0.0
      %240 = vst [vmem:[#allocation2 + $0x60] sm:$0xff] 0.0
      %241 = vst [vmem:[#allocation2 + $0x68] sm:$0xff] 0.0
      %242 = vst [vmem:[#allocation2 + $0x70] sm:$0xff] 0.0
      %243 = vst [vmem:[#allocation2 + $0x78] sm:$0xff] 0.0
    $region103: #{graphsage_forward.8} parent=1 // pred_fallthru
      _
    %s244 = smul.u32 0, 128
    %v245 = vld [vmem:[%s0] sm:$0xff]
    %v246 = vld [vmem:[%s0 + $0x8] sm:$0xff]
    %v247 = vld [vmem:[%s0 + $0x10] sm:$0xff]
    %v248 = vld [vmem:[%s0 + $0x18] sm:$0xff]
    %v249 = vunpack.c.0.s8 %v245
    %v250 = vunpack.c.1.s8 %v245
    %v251 = vunpack.c.2.s8 %v245
    %v252 = vunpack.c.3.s8 %v245
    %v253 = vunpack.c.0.s8 %v246
    %v254 = vunpack.c.1.s8 %v246
    %v255 = vunpack.c.2.s8 %v246
    %v256 = vunpack.c.3.s8 %v246
    %v257 = vunpack.c.0.s8 %v247
    %v258 = vunpack.c.1.s8 %v247
    %v259 = vunpack.c.2.s8 %v247
    %v260 = vunpack.c.3.s8 %v247
    %v261 = vunpack.c.0.s8 %v248
    %v262 = vunpack.c.1.s8 %v248
    %v263 = vunpack.c.2.s8 %v248
    %v264 = vunpack.c.3.s8 %v248
    %v265 = vcvt.s32.f32 %v249
    %v266 = vcvt.s32.f32 %v250
    %v267 = vcvt.s32.f32 %v251
    %v268 = vcvt.s32.f32 %v252
    %v269 = vcvt.s32.f32 %v253
    %v270 = vcvt.s32.f32 %v254
    %v271 = vcvt.s32.f32 %v255
    %v272 = vcvt.s32.f32 %v256
    %v273 = vcvt.s32.f32 %v257
    %v274 = vcvt.s32.f32 %v258
    %v275 = vcvt.s32.f32 %v259
    %v276 = vcvt.s32.f32 %v260
    %v277 = vcvt.s32.f32 %v261
    %v278 = vcvt.s32.f32 %v262
    %v279 = vcvt.s32.f32 %v263
    %v280 = vcvt.s32.f32 %v264
    %v281 = vpack.c.bf16 %v266, %v265
    %v282 = vpack.c.bf16 %v268, %v267
    %v283 = vpack.c.bf16 %v270, %v269
    %v284 = vpack.c.bf16 %v272, %v271
    %v285 = vpack.c.bf16 %v274, %v273
    %v286 = vpack.c.bf16 %v276, %v275
    %v287 = vpack.c.bf16 %v278, %v277
    %v288 = vpack.c.bf16 %v280, %v279
    %s289 = sshra.s32 %s244, 3
    %s290 = sand.u32 %s244, 7
    %s291 = smul.addr %s289, 4
    %s292 = scalar_lea.vmem [#allocation3], %s291
    %v293 = vld [vmem:[%s292] sm:$0xf]
    %v294 = vld [vmem:[%s292 + $0x4] sm:$0xf]
    %v295 = vld [vmem:[%s292 + $0x8] sm:$0xf]
    %v296 = vld [vmem:[%s292 + $0xc] sm:$0xf]
    %v297 = vld [vmem:[%s292 + $0x10] sm:$0xf]
    %v298 = vld [vmem:[%s292 + $0x14] sm:$0xf]
    %v299 = vld [vmem:[%s292 + $0x18] sm:$0xf]
    %v300 = vld [vmem:[%s292 + $0x1c] sm:$0xf]
    %v301 = vld [vmem:[%s292 + $0x20] sm:$0xf]
    %v302 = vld [vmem:[%s292 + $0x24] sm:$0xf]
    %v303 = vld [vmem:[%s292 + $0x28] sm:$0xf]
    %v304 = vld [vmem:[%s292 + $0x2c] sm:$0xf]
    %v305 = vld [vmem:[%s292 + $0x30] sm:$0xf]
    %v306 = vld [vmem:[%s292 + $0x34] sm:$0xf]
    %v307 = vld [vmem:[%s292 + $0x38] sm:$0xf]
    %v308 = vld [vmem:[%s292 + $0x3c] sm:$0xf]
    %v309 = vld [vmem:[#allocation2] sm:$0xff]
    %v310 = vld [vmem:[#allocation2 + $0x8] sm:$0xff]
    %v311 = vld [vmem:[#allocation2 + $0x10] sm:$0xff]
    %v312 = vld [vmem:[#allocation2 + $0x18] sm:$0xff]
    %v313 = vld [vmem:[#allocation2 + $0x20] sm:$0xff]
    %v314 = vld [vmem:[#allocation2 + $0x28] sm:$0xff]
    %v315 = vld [vmem:[#allocation2 + $0x30] sm:$0xff]
    %v316 = vld [vmem:[#allocation2 + $0x38] sm:$0xff]
    %v317 = vld [vmem:[#allocation2 + $0x40] sm:$0xff]
    %v318 = vld [vmem:[#allocation2 + $0x48] sm:$0xff]
    %v319 = vld [vmem:[#allocation2 + $0x50] sm:$0xff]
    %v320 = vld [vmem:[#allocation2 + $0x58] sm:$0xff]
    %v321 = vld [vmem:[#allocation2 + $0x60] sm:$0xff]
    %v322 = vld [vmem:[#allocation2 + $0x68] sm:$0xff]
    %v323 = vld [vmem:[#allocation2 + $0x70] sm:$0xff]
    %v324 = vld [vmem:[#allocation2 + $0x78] sm:$0xff]
    %v341 = vunpack.c.l.b16 %v293
    %v342 = vunpack.c.l.b16 %v294
    %v343 = vunpack.c.l.b16 %v295
    %v344 = vunpack.c.l.b16 %v296
    %v345 = vunpack.c.l.b16 %v297
    %v346 = vunpack.c.l.b16 %v298
    %v347 = vunpack.c.l.b16 %v299
    %v348 = vunpack.c.l.b16 %v300
    %v349 = vunpack.c.l.b16 %v301
    %v350 = vunpack.c.l.b16 %v302
    %v351 = vunpack.c.l.b16 %v303
    %v352 = vunpack.c.l.b16 %v304
    %v353 = vunpack.c.l.b16 %v305
    %v354 = vunpack.c.l.b16 %v306
    %v355 = vunpack.c.l.b16 %v307
    %v356 = vunpack.c.l.b16 %v308
    %v357 = vpack.c.b16 %v342, %v341
    %v358 = vpack.c.b16 %v344, %v343
    %v359 = vpack.c.b16 %v346, %v345
    %v360 = vpack.c.b16 %v348, %v347
    %v361 = vpack.c.b16 %v350, %v349
    %v362 = vpack.c.b16 %v352, %v351
    %v363 = vpack.c.b16 %v354, %v353
    %v364 = vpack.c.b16 %v356, %v355
    %373 = vmatpush.bf16.msra.mxu0 %v364
    %374 = vmatpush.bf16.msra.mxu0 %v363
    %375 = vmatpush.bf16.msra.mxu0 %v362
    %376 = vmatpush.bf16.msra.mxu0 %v361
    %377 = vmatpush.bf16.msra.mxu0 %v360
    %378 = vmatpush.bf16.msra.mxu0 %v359
    %379 = vmatpush.bf16.msra.mxu0 %v358
    %380 = vmatpush.bf16.msra.mxu0 %v357
    %381 = vmatmul.bf16.gmra.mxu0 %v281
    %v382 = vpop.f32.mrf.mxu0
    %v383 = vadd.f32 0.0, %v382
    %v384 = vpop.f32.mrf.mxu0
    %v385 = vadd.f32 0.0, %v384
    %386 = vmatmul.bf16.gmra.mxu0 %v282
    %v387 = vpop.f32.mrf.mxu0
    %v388 = vadd.f32 0.0, %v387
    %v389 = vpop.f32.mrf.mxu0
    %v390 = vadd.f32 0.0, %v389
    %391 = vmatmul.bf16.gmra.mxu0 %v283
    %v392 = vpop.f32.mrf.mxu0
    %v393 = vadd.f32 0.0, %v392
    %v394 = vpop.f32.mrf.mxu0
    %v395 = vadd.f32 0.0, %v394
    %396 = vmatmul.bf16.gmra.mxu0 %v284
    %v397 = vpop.f32.mrf.mxu0
    %v398 = vadd.f32 0.0, %v397
    %v399 = vpop.f32.mrf.mxu0
    %v400 = vadd.f32 0.0, %v399
    %401 = vmatmul.bf16.gmra.mxu0 %v285
    %v402 = vpop.f32.mrf.mxu0
    %v403 = vadd.f32 0.0, %v402
    %v404 = vpop.f32.mrf.mxu0
    %v405 = vadd.f32 0.0, %v404
    %406 = vmatmul.bf16.gmra.mxu0 %v286
    %v407 = vpop.f32.mrf.mxu0
    %v408 = vadd.f32 0.0, %v407
    %v409 = vpop.f32.mrf.mxu0
    %v410 = vadd.f32 0.0, %v409
    %411 = vmatmul.bf16.gmra.mxu0 %v287
    %v412 = vpop.f32.mrf.mxu0
    %v413 = vadd.f32 0.0, %v412
    %v414 = vpop.f32.mrf.mxu0
    %v415 = vadd.f32 0.0, %v414
    %416 = vmatmul.bf16.gmra.mxu0 %v288
    %v417 = vpop.f32.mrf.mxu0
    %v418 = vadd.f32 0.0, %v417
    %v419 = vpop.f32.mrf.mxu0
    %v420 = vadd.f32 0.0, %v419
    %421 = vdwg.mxu0
    %v422 = vadd.f32 %v309, %v383
    %v423 = vadd.f32 %v310, %v385
    %v424 = vadd.f32 %v311, %v388
    %v425 = vadd.f32 %v312, %v390
    %v426 = vadd.f32 %v313, %v393
    %v427 = vadd.f32 %v314, %v395
    %v428 = vadd.f32 %v315, %v398
    %v429 = vadd.f32 %v316, %v400
    %v430 = vadd.f32 %v317, %v403
    %v431 = vadd.f32 %v318, %v405
    %v432 = vadd.f32 %v319, %v408
    %v433 = vadd.f32 %v320, %v410
    %v434 = vadd.f32 %v321, %v413
    %v435 = vadd.f32 %v322, %v415
    %v436 = vadd.f32 %v323, %v418
    %v437 = vadd.f32 %v324, %v420
    %438 = vst [vmem:[#allocation2] sm:$0xff] %v422
    %439 = vst [vmem:[#allocation2 + $0x8] sm:$0xff] %v423
    %440 = vst [vmem:[#allocation2 + $0x10] sm:$0xff] %v424
    %441 = vst [vmem:[#allocation2 + $0x18] sm:$0xff] %v425
    %442 = vst [vmem:[#allocation2 + $0x20] sm:$0xff] %v426
    %443 = vst [vmem:[#allocation2 + $0x28] sm:$0xff] %v427
    %444 = vst [vmem:[#allocation2 + $0x30] sm:$0xff] %v428
    %445 = vst [vmem:[#allocation2 + $0x38] sm:$0xff] %v429
    %446 = vst [vmem:[#allocation2 + $0x40] sm:$0xff] %v430
    %447 = vst [vmem:[#allocation2 + $0x48] sm:$0xff] %v431
    %448 = vst [vmem:[#allocation2 + $0x50] sm:$0xff] %v432
    %449 = vst [vmem:[#allocation2 + $0x58] sm:$0xff] %v433
    %450 = vst [vmem:[#allocation2 + $0x60] sm:$0xff] %v434
    %451 = vst [vmem:[#allocation2 + $0x68] sm:$0xff] %v435
    %452 = vst [vmem:[#allocation2 + $0x70] sm:$0xff] %v436
    %453 = vst [vmem:[#allocation2 + $0x78] sm:$0xff] %v437
    // Predicated region
    $region104: #{graphsage_forward.8} parent=1 // pred_check
      %p454 = pneg %p224
    $region105: #{graphsage_forward.8} parent=1 // pred_check_branch
      %456 = sbr.rel (%p454) target = $region107
    $region106: #{graphsage_forward.8} parent=1 // pred_region
      %v457 = vld [vmem:[#allocation2] sm:$0xff]
      %v458 = vld [vmem:[#allocation2 + $0x8] sm:$0xff]
      %v459 = vld [vmem:[#allocation2 + $0x10] sm:$0xff]
      %v460 = vld [vmem:[#allocation2 + $0x18] sm:$0xff]
      %v461 = vld [vmem:[#allocation2 + $0x20] sm:$0xff]
      %v462 = vld [vmem:[#allocation2 + $0x28] sm:$0xff]
      %v463 = vld [vmem:[#allocation2 + $0x30] sm:$0xff]
      %v464 = vld [vmem:[#allocation2 + $0x38] sm:$0xff]
      %v465 = vld [vmem:[#allocation2 + $0x40] sm:$0xff]
      %v466 = vld [vmem:[#allocation2 + $0x48] sm:$0xff]
      %v467 = vld [vmem:[#allocation2 + $0x50] sm:$0xff]
      %v468 = vld [vmem:[#allocation2 + $0x58] sm:$0xff]
      %v469 = vld [vmem:[#allocation2 + $0x60] sm:$0xff]
      %v470 = vld [vmem:[#allocation2 + $0x68] sm:$0xff]
      %v471 = vld [vmem:[#allocation2 + $0x70] sm:$0xff]
      %v472 = vld [vmem:[#allocation2 + $0x78] sm:$0xff]
      %v473 = vld [vmem:[%s3] sm:$0xff]
      %v474 = vld [vmem:[%s3 + $0x8] sm:$0xff]
      %v475 = vld [vmem:[%s3 + $0x10] sm:$0xff]
      %v476 = vld [vmem:[%s3 + $0x18] sm:$0xff]
      %v477 = vld [vmem:[%s3 + $0x20] sm:$0xff]
      %v478 = vld [vmem:[%s3 + $0x28] sm:$0xff]
      %v479 = vld [vmem:[%s3 + $0x30] sm:$0xff]
      %v480 = vld [vmem:[%s3 + $0x38] sm:$0xff]
      %v481 = vld [vmem:[%s3 + $0x40] sm:$0xff]
      %v482 = vld [vmem:[%s3 + $0x48] sm:$0xff]
      %v483 = vld [vmem:[%s3 + $0x50] sm:$0xff]
      %v484 = vld [vmem:[%s3 + $0x58] sm:$0xff]
      %v485 = vld [vmem:[%s3 + $0x60] sm:$0xff]
      %v486 = vld [vmem:[%s3 + $0x68] sm:$0xff]
      %v487 = vld [vmem:[%s3 + $0x70] sm:$0xff]
      %v488 = vld [vmem:[%s3 + $0x78] sm:$0xff]
      %490 = vset.pattern.permute.xlu0 0
      %491 = vperm.xlu0 %490, %v473
      %v492 = vpop.permute.xlu0 %491
      %495 = vset.pattern.permute.xlu0 0
      %496 = vperm.xlu0 %495, %v474
      %v497 = vpop.permute.xlu0 %496
      %500 = vset.pattern.permute.xlu0 0
      %501 = vperm.xlu0 %500, %v475
      %v502 = vpop.permute.xlu0 %501
      %505 = vset.pattern.permute.xlu0 0
      %506 = vperm.xlu0 %505, %v476
      %v507 = vpop.permute.xlu0 %506
      %510 = vset.pattern.permute.xlu0 0
      %511 = vperm.xlu0 %510, %v477
      %v512 = vpop.permute.xlu0 %511
      %515 = vset.pattern.permute.xlu0 0
      %516 = vperm.xlu0 %515, %v478
      %v517 = vpop.permute.xlu0 %516
      %520 = vset.pattern.permute.xlu0 0
      %521 = vperm.xlu0 %520, %v479
      %v522 = vpop.permute.xlu0 %521
      %525 = vset.pattern.permute.xlu0 0
      %526 = vperm.xlu0 %525, %v480
      %v527 = vpop.permute.xlu0 %526
      %530 = vset.pattern.permute.xlu0 0
      %531 = vperm.xlu0 %530, %v481
      %v532 = vpop.permute.xlu0 %531
      %535 = vset.pattern.permute.xlu0 0
      %536 = vperm.xlu0 %535, %v482
      %v537 = vpop.permute.xlu0 %536
      %540 = vset.pattern.permute.xlu0 0
      %541 = vperm.xlu0 %540, %v483
      %v542 = vpop.permute.xlu0 %541
      %545 = vset.pattern.permute.xlu0 0
      %546 = vperm.xlu0 %545, %v484
      %v547 = vpop.permute.xlu0 %546
      %550 = vset.pattern.permute.xlu0 0
      %551 = vperm.xlu0 %550, %v485
      %v552 = vpop.permute.xlu0 %551
      %555 = vset.pattern.permute.xlu0 0
      %556 = vperm.xlu0 %555, %v486
      %v557 = vpop.permute.xlu0 %556
      %560 = vset.pattern.permute.xlu0 0
      %561 = vperm.xlu0 %560, %v487
      %v562 = vpop.permute.xlu0 %561
      %565 = vset.pattern.permute.xlu0 0
      %566 = vperm.xlu0 %565, %v488
      %v567 = vpop.permute.xlu0 %566
      %v569 = vmul.f32 %v457, %v492
      %v570 = vmul.f32 %v458, %v497
      %v571 = vmul.f32 %v459, %v502
      %v572 = vmul.f32 %v460, %v507
      %v573 = vmul.f32 %v461, %v512
      %v574 = vmul.f32 %v462, %v517
      %v575 = vmul.f32 %v463, %v522
      %v576 = vmul.f32 %v464, %v527
      %v577 = vmul.f32 %v465, %v532
      %v578 = vmul.f32 %v466, %v537
      %v579 = vmul.f32 %v467, %v542
      %v580 = vmul.f32 %v468, %v547
      %v581 = vmul.f32 %v469, %v552
      %v582 = vmul.f32 %v470, %v557
      %v583 = vmul.f32 %v471, %v562
      %v584 = vmul.f32 %v472, %v567
      %v585 = vld [vmem:[#allocation4] sm:$0xf]
      %v586 = vld [vmem:[#allocation4 + $0x4] sm:$0xf]
      %v587 = vld [vmem:[#allocation4 + $0x8] sm:$0xf]
      %v588 = vld [vmem:[#allocation4 + $0xc] sm:$0xf]
      %v589 = vld [vmem:[#allocation4 + $0x10] sm:$0xf]
      %v590 = vld [vmem:[#allocation4 + $0x14] sm:$0xf]
      %v591 = vld [vmem:[#allocation4 + $0x18] sm:$0xf]
      %v592 = vld [vmem:[#allocation4 + $0x1c] sm:$0xf]
      %v593 = vld [vmem:[#allocation4 + $0x20] sm:$0xf]
      %v594 = vld [vmem:[#allocation4 + $0x24] sm:$0xf]
      %v595 = vld [vmem:[#allocation4 + $0x28] sm:$0xf]
      %v596 = vld [vmem:[#allocation4 + $0x2c] sm:$0xf]
      %v597 = vld [vmem:[#allocation4 + $0x30] sm:$0xf]
      %v598 = vld [vmem:[#allocation4 + $0x34] sm:$0xf]
      %v599 = vld [vmem:[#allocation4 + $0x38] sm:$0xf]
      %v600 = vld [vmem:[#allocation4 + $0x3c] sm:$0xf]
      %v601 = vunpack.c.l.bf16 %v585
      %v602 = vunpack.c.l.bf16 %v586
      %v603 = vunpack.c.l.bf16 %v587
      %v604 = vunpack.c.l.bf16 %v588
      %v605 = vunpack.c.l.bf16 %v589
      %v606 = vunpack.c.l.bf16 %v590
      %v607 = vunpack.c.l.bf16 %v591
      %v608 = vunpack.c.l.bf16 %v592
      %v609 = vunpack.c.l.bf16 %v593
      %v610 = vunpack.c.l.bf16 %v594
      %v611 = vunpack.c.l.bf16 %v595
      %v612 = vunpack.c.l.bf16 %v596
      %v613 = vunpack.c.l.bf16 %v597
      %v614 = vunpack.c.l.bf16 %v598
      %v615 = vunpack.c.l.bf16 %v599
      %v616 = vunpack.c.l.bf16 %v600
      %v617 = vadd.f32 %v569, %v601
      %v618 = vadd.f32 %v570, %v602
      %v619 = vadd.f32 %v571, %v603
      %v620 = vadd.f32 %v572, %v604
      %v621 = vadd.f32 %v573, %v605
      %v622 = vadd.f32 %v574, %v606
      %v623 = vadd.f32 %v575, %v607
      %v624 = vadd.f32 %v576, %v608
      %v625 = vadd.f32 %v577, %v609
      %v626 = vadd.f32 %v578, %v610
      %v627 = vadd.f32 %v579, %v611
      %v628 = vadd.f32 %v580, %v612
      %v629 = vadd.f32 %v581, %v613
      %v630 = vadd.f32 %v582, %v614
      %v631 = vadd.f32 %v583, %v615
      %v632 = vadd.f32 %v584, %v616
      %v633 = vmax.f32 %v617, 0.0
      %v634 = vmax.f32 %v618, 0.0
      %v635 = vmax.f32 %v619, 0.0
      %v636 = vmax.f32 %v620, 0.0
      %v637 = vmax.f32 %v621, 0.0
      %v638 = vmax.f32 %v622, 0.0
      %v639 = vmax.f32 %v623, 0.0
      %v640 = vmax.f32 %v624, 0.0
      %v641 = vmax.f32 %v625, 0.0
      %v642 = vmax.f32 %v626, 0.0
      %v643 = vmax.f32 %v627, 0.0
      %v644 = vmax.f32 %v628, 0.0
      %v645 = vmax.f32 %v629, 0.0
      %v646 = vmax.f32 %v630, 0.0
      %v647 = vmax.f32 %v631, 0.0
      %v648 = vmax.f32 %v632, 0.0
      %v649 = vpack.c.bf16 %v633, %v633
      %v650 = vpack.c.bf16 %v634, %v634
      %v651 = vpack.c.bf16 %v635, %v635
      %v652 = vpack.c.bf16 %v636, %v636
      %v653 = vpack.c.bf16 %v637, %v637
      %v654 = vpack.c.bf16 %v638, %v638
      %v655 = vpack.c.bf16 %v639, %v639
      %v656 = vpack.c.bf16 %v640, %v640
      %v657 = vpack.c.bf16 %v641, %v641
      %v658 = vpack.c.bf16 %v642, %v642
      %v659 = vpack.c.bf16 %v643, %v643
      %v660 = vpack.c.bf16 %v644, %v644
      %v661 = vpack.c.bf16 %v645, %v645
      %v662 = vpack.c.bf16 %v646, %v646
      %v663 = vpack.c.bf16 %v647, %v647
      %v664 = vpack.c.bf16 %v648, %v648
      %665 = vst [vmem:[%s4] sm:$0xf] %v649
      %666 = vst [vmem:[%s4 + $0x4] sm:$0xf] %v650
      %667 = vst [vmem:[%s4 + $0x8] sm:$0xf] %v651
      %668 = vst [vmem:[%s4 + $0xc] sm:$0xf] %v652
      %669 = vst [vmem:[%s4 + $0x10] sm:$0xf] %v653
      %670 = vst [vmem:[%s4 + $0x14] sm:$0xf] %v654
      %671 = vst [vmem:[%s4 + $0x18] sm:$0xf] %v655
      %672 = vst [vmem:[%s4 + $0x1c] sm:$0xf] %v656
      %673 = vst [vmem:[%s4 + $0x20] sm:$0xf] %v657
      %674 = vst [vmem:[%s4 + $0x24] sm:$0xf] %v658
      %675 = vst [vmem:[%s4 + $0x28] sm:$0xf] %v659
      %676 = vst [vmem:[%s4 + $0x2c] sm:$0xf] %v660
      %677 = vst [vmem:[%s4 + $0x30] sm:$0xf] %v661
      %678 = vst [vmem:[%s4 + $0x34] sm:$0xf] %v662
      %679 = vst [vmem:[%s4 + $0x38] sm:$0xf] %v663
      %680 = vst [vmem:[%s4 + $0x3c] sm:$0xf] %v664
    $region107: #{graphsage_forward.8} parent=1 // pred_fallthru
      _
    // Predicated region
    $region108: #{graphsage_forward.8} parent=1 // pred_check
      _
    $region109: #{graphsage_forward.8} parent=1 // pred_check_branch
      %682 = sbr.rel (0) target = $region111
    $region110: #{graphsage_forward.8} parent=1 // pred_region
      _
    $region111: #{graphsage_forward.8} parent=1 // pred_fallthru
      _
    // Predicated region
    $region112: #{graphsage_forward.8} parent=1 // pred_check
      _
    $region113: #{graphsage_forward.8} parent=1 // pred_check_branch
      %684 = sbr.rel (0) target = $region115
    $region114: #{graphsage_forward.8} parent=1 // pred_region
      _
    $region115: #{graphsage_forward.8} parent=1 // pred_fallthru
      _

// kernel: graphsage_forward.13
$region0: #{graphsage_forward.13}
  #allocation0 [shape = 'u32[]', space=smem, size = 0x4, offset = 0x4, fixed_abs, tag = 'smem constant byte address 0x4 - core index']
  #allocation1 [shape = 'u32[72,128]{1,0:T(1,128)}', space=vmem, size = 0x9000, scoped, tag = 'internal scratch']
  %s0 = inlined_call_operand.vmem [shape: s32[128,1], index: 0, kind: input, shape index: {}]
  %s1 = inlined_call_operand.vmem [shape: bf16[128,128], index: 1, kind: input, shape index: {}]
  %s2 = inlined_call_operand.vmem [shape: f32[2,128], index: 2, kind: output, shape index: {}]
  %s3 = sld [smem:[#allocation0]]
  $region22: #{graphsage_forward.13} parent=0
    _
  %s5 = ssub.s32 1, %s3
  %s6 = scalar_select 0, %s5, %s3
  // Predicated region
  $region2: #{graphsage_forward.13} parent=0 // pred_check
    _
  $region3: #{graphsage_forward.13} parent=0 // pred_check_branch
    %8 = sbr.rel (0) target = $region5
  $region4: #{graphsage_forward.13} parent=0 // pred_region
    _
  $region5: #{graphsage_forward.13} parent=0 // pred_fallthru
    _
  // Predicated region
  $region6: #{graphsage_forward.13} parent=0 // pred_check
    _
  $region7: #{graphsage_forward.13} parent=0 // pred_check_branch
    %10 = sbr.rel (0) target = $region9
  $region8: #{graphsage_forward.13} parent=0 // pred_region
    _
  $region9: #{graphsage_forward.13} parent=0 // pred_fallthru
    _
  %p11 = scmp.eq.s32.totalorder 0, 0
  // Predicated region
  $region10: #{graphsage_forward.13} parent=0 // pred_check
    %p12 = pneg %p11
  $region11: #{graphsage_forward.13} parent=0 // pred_check_branch
    %14 = sbr.rel (%p12) target = $region13
  $region12: #{graphsage_forward.13} parent=0 // pred_region
    %15 = vst [vmem:[%s2] sm:$0x3] -1e+30
  $region13: #{graphsage_forward.13} parent=0 // pred_fallthru
    _
  %v16 = vld [vmem:[%s1] sm:$0xf]
  %v17 = vld [vmem:[%s1 + $0x4] sm:$0xf]
  %v18 = vld [vmem:[%s1 + $0x8] sm:$0xf]
  %v19 = vld [vmem:[%s1 + $0xc] sm:$0xf]
  %v20 = vld [vmem:[%s1 + $0x10] sm:$0xf]
  %v21 = vld [vmem:[%s1 + $0x14] sm:$0xf]
  %v22 = vld [vmem:[%s1 + $0x18] sm:$0xf]
  %v23 = vld [vmem:[%s1 + $0x1c] sm:$0xf]
  %v24 = vld [vmem:[%s1 + $0x20] sm:$0xf]
  %v25 = vld [vmem:[%s1 + $0x24] sm:$0xf]
  %v26 = vld [vmem:[%s1 + $0x28] sm:$0xf]
  %v27 = vld [vmem:[%s1 + $0x2c] sm:$0xf]
  %v28 = vld [vmem:[%s1 + $0x30] sm:$0xf]
  %v29 = vld [vmem:[%s1 + $0x34] sm:$0xf]
  %v30 = vld [vmem:[%s1 + $0x38] sm:$0xf]
  %v31 = vld [vmem:[%s1 + $0x3c] sm:$0xf]
  %v32 = vunpack.c.l.bf16 %v16
  %v33 = vunpack.c.l.bf16 %v17
  %v34 = vunpack.c.l.bf16 %v18
  %v35 = vunpack.c.l.bf16 %v19
  %v36 = vunpack.c.l.bf16 %v20
  %v37 = vunpack.c.l.bf16 %v21
  %v38 = vunpack.c.l.bf16 %v22
  %v39 = vunpack.c.l.bf16 %v23
  %v40 = vunpack.c.l.bf16 %v24
  %v41 = vunpack.c.l.bf16 %v25
  %v42 = vunpack.c.l.bf16 %v26
  %v43 = vunpack.c.l.bf16 %v27
  %v44 = vunpack.c.l.bf16 %v28
  %v45 = vunpack.c.l.bf16 %v29
  %v46 = vunpack.c.l.bf16 %v30
  %v47 = vunpack.c.l.bf16 %v31
  %v48 = vld [vmem:[%s0] sm:$0xff]
  %v49 = vld [vmem:[%s0 + $0x8] sm:$0xff]
  %v50 = vld [vmem:[%s0 + $0x10] sm:$0xff]
  %v51 = vld [vmem:[%s0 + $0x18] sm:$0xff]
  %v52 = vld [vmem:[%s0 + $0x20] sm:$0xff]
  %v53 = vld [vmem:[%s0 + $0x28] sm:$0xff]
  %v54 = vld [vmem:[%s0 + $0x30] sm:$0xff]
  %v55 = vld [vmem:[%s0 + $0x38] sm:$0xff]
  %v56 = vld [vmem:[%s0 + $0x40] sm:$0xff]
  %v57 = vld [vmem:[%s0 + $0x48] sm:$0xff]
  %v58 = vld [vmem:[%s0 + $0x50] sm:$0xff]
  %v59 = vld [vmem:[%s0 + $0x58] sm:$0xff]
  %v60 = vld [vmem:[%s0 + $0x60] sm:$0xff]
  %v61 = vld [vmem:[%s0 + $0x68] sm:$0xff]
  %v62 = vld [vmem:[%s0 + $0x70] sm:$0xff]
  %v63 = vld [vmem:[%s0 + $0x78] sm:$0xff]
  %vm64 = vcmp.eq.s32.totalorder %v48, 0
  %vm65 = vcmp.eq.s32.totalorder %v49, 0
  %vm66 = vcmp.eq.s32.totalorder %v50, 0
  %vm67 = vcmp.eq.s32.totalorder %v51, 0
  %vm68 = vcmp.eq.s32.totalorder %v52, 0
  %vm69 = vcmp.eq.s32.totalorder %v53, 0
  %vm70 = vcmp.eq.s32.totalorder %v54, 0
  %vm71 = vcmp.eq.s32.totalorder %v55, 0
  %vm72 = vcmp.eq.s32.totalorder %v56, 0
  %vm73 = vcmp.eq.s32.totalorder %v57, 0
  %vm74 = vcmp.eq.s32.totalorder %v58, 0
  %vm75 = vcmp.eq.s32.totalorder %v59, 0
  %vm76 = vcmp.eq.s32.totalorder %v60, 0
  %vm77 = vcmp.eq.s32.totalorder %v61, 0
  %vm78 = vcmp.eq.s32.totalorder %v62, 0
  %vm79 = vcmp.eq.s32.totalorder %v63, 0
  %v80 = vsel %vm64, 1, 0
  %v81 = vsel %vm65, 1, 0
  %v82 = vsel %vm66, 1, 0
  %v83 = vsel %vm67, 1, 0
  %v84 = vsel %vm68, 1, 0
  %v85 = vsel %vm69, 1, 0
  %v86 = vsel %vm70, 1, 0
  %v87 = vsel %vm71, 1, 0
  %v88 = vsel %vm72, 1, 0
  %v89 = vsel %vm73, 1, 0
  %v90 = vsel %vm74, 1, 0
  %v91 = vsel %vm75, 1, 0
  %v92 = vsel %vm76, 1, 0
  %v93 = vsel %vm77, 1, 0
  %v94 = vsel %vm78, 1, 0
  %v95 = vsel %vm79, 1, 0
  %96 = vset.pattern.permute.xlu0 0
  %97 = vperm.xlu0 %96, %v80
  %v98 = vpop.permute.xlu0 %97
  %99 = vset.pattern.permute.xlu0 0
  %100 = vperm.xlu0 %99, %v81
  %v101 = vpop.permute.xlu0 %100
  %102 = vset.pattern.permute.xlu0 0
  %103 = vperm.xlu0 %102, %v82
  %v104 = vpop.permute.xlu0 %103
  %105 = vset.pattern.permute.xlu0 0
  %106 = vperm.xlu0 %105, %v83
  %v107 = vpop.permute.xlu0 %106
  %108 = vset.pattern.permute.xlu0 0
  %109 = vperm.xlu0 %108, %v84
  %v110 = vpop.permute.xlu0 %109
  %111 = vset.pattern.permute.xlu0 0
  %112 = vperm.xlu0 %111, %v85
  %v113 = vpop.permute.xlu0 %112
  %114 = vset.pattern.permute.xlu0 0
  %115 = vperm.xlu0 %114, %v86
  %v116 = vpop.permute.xlu0 %115
  %117 = vset.pattern.permute.xlu0 0
  %118 = vperm.xlu0 %117, %v87
  %v119 = vpop.permute.xlu0 %118
  %120 = vset.pattern.permute.xlu0 0
  %121 = vperm.xlu0 %120, %v88
  %v122 = vpop.permute.xlu0 %121
  %123 = vset.pattern.permute.xlu0 0
  %124 = vperm.xlu0 %123, %v89
  %v125 = vpop.permute.xlu0 %124
  %126 = vset.pattern.permute.xlu0 0
  %127 = vperm.xlu0 %126, %v90
  %v128 = vpop.permute.xlu0 %127
  %129 = vset.pattern.permute.xlu0 0
  %130 = vperm.xlu0 %129, %v91
  %v131 = vpop.permute.xlu0 %130
  %132 = vset.pattern.permute.xlu0 0
  %133 = vperm.xlu0 %132, %v92
  %v134 = vpop.permute.xlu0 %133
  %135 = vset.pattern.permute.xlu0 0
  %136 = vperm.xlu0 %135, %v93
  %v137 = vpop.permute.xlu0 %136
  %138 = vset.pattern.permute.xlu0 0
  %139 = vperm.xlu0 %138, %v94
  %v140 = vpop.permute.xlu0 %139
  %141 = vset.pattern.permute.xlu0 0
  %142 = vperm.xlu0 %141, %v95
  %v143 = vpop.permute.xlu0 %142
  %vm144 = vcmp.eq.s32.totalorder %v98, 1
  %vm145 = vcmp.eq.s32.totalorder %v101, 1
  %vm146 = vcmp.eq.s32.totalorder %v104, 1
  %vm147 = vcmp.eq.s32.totalorder %v107, 1
  %vm148 = vcmp.eq.s32.totalorder %v110, 1
  %vm149 = vcmp.eq.s32.totalorder %v113, 1
  %vm150 = vcmp.eq.s32.totalorder %v116, 1
  %vm151 = vcmp.eq.s32.totalorder %v119, 1
  %vm152 = vcmp.eq.s32.totalorder %v122, 1
  %vm153 = vcmp.eq.s32.totalorder %v125, 1
  %vm154 = vcmp.eq.s32.totalorder %v128, 1
  %vm155 = vcmp.eq.s32.totalorder %v131, 1
  %vm156 = vcmp.eq.s32.totalorder %v134, 1
  %vm157 = vcmp.eq.s32.totalorder %v137, 1
  %vm158 = vcmp.eq.s32.totalorder %v140, 1
  %vm159 = vcmp.eq.s32.totalorder %v143, 1
  %v160 = vsel %vm144, %v32, -1e+30
  %v161 = vsel %vm145, %v33, -1e+30
  %v162 = vsel %vm146, %v34, -1e+30
  %v163 = vsel %vm147, %v35, -1e+30
  %v164 = vsel %vm148, %v36, -1e+30
  %v165 = vsel %vm149, %v37, -1e+30
  %v166 = vsel %vm150, %v38, -1e+30
  %v167 = vsel %vm151, %v39, -1e+30
  %v168 = vsel %vm152, %v40, -1e+30
  %v169 = vsel %vm153, %v41, -1e+30
  %v170 = vsel %vm154, %v42, -1e+30
  %v171 = vsel %vm155, %v43, -1e+30
  %v172 = vsel %vm156, %v44, -1e+30
  %v173 = vsel %vm157, %v45, -1e+30
  %v174 = vsel %vm158, %v46, -1e+30
  %v175 = vsel %vm159, %v47, -1e+30
  %v176 = vmax.f32 %v160, %v164
  %v177 = vmax.f32 %v161, %v165
  %v178 = vmax.f32 %v162, %v166
  %v179 = vmax.f32 %v163, %v167
  %v180 = vmax.f32 %v176, %v168
  %v181 = vmax.f32 %v177, %v169
  %v182 = vmax.f32 %v178, %v170
  %v183 = vmax.f32 %v179, %v171
  %v184 = vmax.f32 %v180, %v172
  %v185 = vmax.f32 %v181, %v173
  %v186 = vmax.f32 %v182, %v174
  %v187 = vmax.f32 %v183, %v175
  %v188 = vmax.f32 %v184, %v185
  %v189 = vmax.f32 %v186, %v187
  %v190 = vmax.f32 %v188, %v189
  %v191 = vrot.slane %v190, 4
  %v192 = vmax.f32 %v190, %v191
  %v193 = vrot.slane %v192, 2
  %v194 = vmax.f32 %v192, %v193
  %v195 = vrot.slane %v194, 1
  %v196 = vmax.f32 %v194, %v195
  %v197 = vld [vmem:[%s2] sm:$0x1]
  %v198 = vmax.f32 %v197, %v196
  %199 = vst [vmem:[%s2] sm:$0x1] %v198
  %vm200 = vcmp.eq.s32.totalorder %v48, 1
  %vm201 = vcmp.eq.s32.totalorder %v49, 1
  %vm202 = vcmp.eq.s32.totalorder %v50, 1
  %vm203 = vcmp.eq.s32.totalorder %v51, 1
  %vm204 = vcmp.eq.s32.totalorder %v52, 1
  %vm205 = vcmp.eq.s32.totalorder %v53, 1
  %vm206 = vcmp.eq.s32.totalorder %v54, 1
  %vm207 = vcmp.eq.s32.totalorder %v55, 1
  %vm208 = vcmp.eq.s32.totalorder %v56, 1
  %vm209 = vcmp.eq.s32.totalorder %v57, 1
  %vm210 = vcmp.eq.s32.totalorder %v58, 1
  %vm211 = vcmp.eq.s32.totalorder %v59, 1
  %vm212 = vcmp.eq.s32.totalorder %v60, 1
  %vm213 = vcmp.eq.s32.totalorder %v61, 1
  %vm214 = vcmp.eq.s32.totalorder %v62, 1
  %vm215 = vcmp.eq.s32.totalorder %v63, 1
  %v216 = vsel %vm200, 1, 0
  %v217 = vsel %vm201, 1, 0
  %v218 = vsel %vm202, 1, 0
  %v219 = vsel %vm203, 1, 0
  %v220 = vsel %vm204, 1, 0
  %v221 = vsel %vm205, 1, 0
  %v222 = vsel %vm206, 1, 0
  %v223 = vsel %vm207, 1, 0
  %v224 = vsel %vm208, 1, 0
  %v225 = vsel %vm209, 1, 0
  %v226 = vsel %vm210, 1, 0
  %v227 = vsel %vm211, 1, 0
  %v228 = vsel %vm212, 1, 0
  %v229 = vsel %vm213, 1, 0
  %v230 = vsel %vm214, 1, 0
  %v231 = vsel %vm215, 1, 0
  %232 = vset.pattern.permute.xlu0 0
  %233 = vperm.xlu0 %232, %v216
  %v234 = vpop.permute.xlu0 %233
  %235 = vset.pattern.permute.xlu0 0
  %236 = vperm.xlu0 %235, %v217
  %v237 = vpop.permute.xlu0 %236
  %238 = vset.pattern.permute.xlu0 0
  %239 = vperm.xlu0 %238, %v218
  %v240 = vpop.permute.xlu0 %239
  %241 = vset.pattern.permute.xlu0 0
  %242 = vperm.xlu0 %241, %v219
  %v243 = vpop.permute.xlu0 %242
  %244 = vset.pattern.permute.xlu0 0
  %245 = vperm.xlu0 %244, %v220
  %v246 = vpop.permute.xlu0 %245
  %247 = vset.pattern.permute.xlu0 0
  %248 = vperm.xlu0 %247, %v221
  %v249 = vpop.permute.xlu0 %248
  %250 = vset.pattern.permute.xlu0 0
  %251 = vperm.xlu0 %250, %v222
  %v252 = vpop.permute.xlu0 %251
  %253 = vset.pattern.permute.xlu0 0
  %254 = vperm.xlu0 %253, %v223
  %v255 = vpop.permute.xlu0 %254
  %256 = vset.pattern.permute.xlu0 0
  %257 = vperm.xlu0 %256, %v224
  %v258 = vpop.permute.xlu0 %257
  %259 = vset.pattern.permute.xlu0 0
  %260 = vperm.xlu0 %259, %v225
  %v261 = vpop.permute.xlu0 %260
  %262 = vset.pattern.permute.xlu0 0
  %263 = vperm.xlu0 %262, %v226
  %v264 = vpop.permute.xlu0 %263
  %265 = vset.pattern.permute.xlu0 0
  %266 = vperm.xlu0 %265, %v227
  %v267 = vpop.permute.xlu0 %266
  %268 = vset.pattern.permute.xlu0 0
  %269 = vperm.xlu0 %268, %v228
  %v270 = vpop.permute.xlu0 %269
  %271 = vset.pattern.permute.xlu0 0
  %272 = vperm.xlu0 %271, %v229
  %v273 = vpop.permute.xlu0 %272
  %274 = vset.pattern.permute.xlu0 0
  %275 = vperm.xlu0 %274, %v230
  %v276 = vpop.permute.xlu0 %275
  %277 = vset.pattern.permute.xlu0 0
  %278 = vperm.xlu0 %277, %v231
  %v279 = vpop.permute.xlu0 %278
  %vm280 = vcmp.eq.s32.totalorder %v234, 1
  %vm281 = vcmp.eq.s32.totalorder %v237, 1
  %vm282 = vcmp.eq.s32.totalorder %v240, 1
  %vm283 = vcmp.eq.s32.totalorder %v243, 1
  %vm284 = vcmp.eq.s32.totalorder %v246, 1
  %vm285 = vcmp.eq.s32.totalorder %v249, 1
  %vm286 = vcmp.eq.s32.totalorder %v252, 1
  %vm287 = vcmp.eq.s32.totalorder %v255, 1
  %vm288 = vcmp.eq.s32.totalorder %v258, 1
  %vm289 = vcmp.eq.s32.totalorder %v261, 1
  %vm290 = vcmp.eq.s32.totalorder %v264, 1
  %vm291 = vcmp.eq.s32.totalorder %v267, 1
  %vm292 = vcmp.eq.s32.totalorder %v270, 1
  %vm293 = vcmp.eq.s32.totalorder %v273, 1
  %vm294 = vcmp.eq.s32.totalorder %v276, 1
  %vm295 = vcmp.eq.s32.totalorder %v279, 1
  %v296 = vsel %vm280, %v32, -1e+30
  %v297 = vsel %vm281, %v33, -1e+30
  %v298 = vsel %vm282, %v34, -1e+30
  %v299 = vsel %vm283, %v35, -1e+30
  %v300 = vsel %vm284, %v36, -1e+30
  %v301 = vsel %vm285, %v37, -1e+30
  %v302 = vsel %vm286, %v38, -1e+30
  %v303 = vsel %vm287, %v39, -1e+30
  %v304 = vsel %vm288, %v40, -1e+30
  %v305 = vsel %vm289, %v41, -1e+30
  %v306 = vsel %vm290, %v42, -1e+30
  %v307 = vsel %vm291, %v43, -1e+30
  %v308 = vsel %vm292, %v44, -1e+30
  %v309 = vsel %vm293, %v45, -1e+30
  %v310 = vsel %vm294, %v46, -1e+30
  %v311 = vsel %vm295, %v47, -1e+30
  %v312 = vmax.f32 %v296, %v300
  %v313 = vmax.f32 %v297, %v301
  %v314 = vmax.f32 %v298, %v302
  %v315 = vmax.f32 %v299, %v303
  %v316 = vmax.f32 %v312, %v304
  %v317 = vmax.f32 %v313, %v305
  %v318 = vmax.f32 %v314, %v306
  %v319 = vmax.f32 %v315, %v307
  %v320 = vmax.f32 %v316, %v308
  %v321 = vmax.f32 %v317, %v309
  %v322 = vmax.f32 %v318, %v310
  %v323 = vmax.f32 %v319, %v311
  %v324 = vmax.f32 %v320, %v321
  %v325 = vmax.f32 %v322, %v323
  %v326 = vmax.f32 %v324, %v325
  %v327 = vrot.slane %v326, 4
  %v328 = vmax.f32 %v326, %v327
  %v329 = vrot.slane %v328, 2
  %v330 = vmax.f32 %v328, %v329
  %v331 = vrot.slane %v330, 1
  %v332 = vmax.f32 %v330, %v331
  %v333 = vld [vmem:[%s2 + $0x1] sm:$0x1]
  %v334 = vmax.f32 %v333, %v332
  %335 = vst [vmem:[%s2 + $0x1] sm:$0x1] %v334
  // Predicated region
  $region14: #{graphsage_forward.13} parent=0 // pred_check
    _
  $region15: #{graphsage_forward.13} parent=0 // pred_check_branch
    %337 = sbr.rel (0) target = $region17
  $region16: #{graphsage_forward.13} parent=0 // pred_region
    _
  $region17: #{graphsage_forward.13} parent=0 // pred_fallthru
    _
  // Predicated region
  $region18: #{graphsage_forward.13} parent=0 // pred_check
    _
  $region19: #{graphsage_forward.13} parent=0 // pred_check_branch
    %339 = sbr.rel (0) target = $region21
  $region20: #{graphsage_forward.13} parent=0 // pred_region
    _
  $region21: #{graphsage_forward.13} parent=0 // pred_fallthru
    _

</llo_original>
